<compile_context>
chip_gen: v5e
topology: v5e:2x2
jax: 0.10.0
libtpu: 0.0.40
codegen_flags: <defaults>
</compile_context>

<pallas_src>
import jax
import jax.numpy as jnp
from jax.experimental import pallas as pl
from jax.experimental.pallas import tpu as pltpu

IM_CHANNELS = 1
IM_SIZE = (28, 28)
D_IN = IM_SIZE[0] * IM_SIZE[1] * IM_CHANNELS        # 784
LAYERS_DIM = [D_IN, 512, 256, 128, 1]
LN_EPS = 1e-5
LEAKY_SLOPE = 0.01                                   # torch.nn.LeakyReLU default
TB_MAX = 1024                                        # max batch rows per grid step


def _round_up(x, m):
    return (x + m - 1) // m * m


def _pick_epilogue_dtype():
    """bf16 elementwise epilogue on chips with a bf16 VPU (v6e/v7x), f32 otherwise."""
    try:
        kind = jax.devices()[0].device_kind.lower()
    except Exception:
        return jnp.bfloat16
    if any(tag in kind for tag in ("v2", "v3", "v4", "v5")):
        return jnp.float32
    return jnp.bfloat16


EPILOGUE_DTYPE = _pick_epilogue_dtype()


def _disc_kernel(x_ref,
                 w1_ref, b1_ref, g1_ref, be1_ref,
                 w2_ref, b2_ref, g2_ref, be2_ref,
                 w3_ref, b3_ref, g3_ref, be3_ref,
                 w4_ref, b4_ref,
                 o_ref):
    """Fused forward for one batch tile: 3x (matmul + LN + leaky-relu) + final linear."""

    def hidden_block(h_bf16, w_ref, b_ref, g_ref, be_ref):
        # Linear on the MXU: bf16 operands, f32 accumulation.
        z = jnp.dot(h_bf16, w_ref[...], preferred_element_type=jnp.float32) + b_ref[...]
        # Two-pass LayerNorm stats (f32): no cancellation / negative-variance risk.
        mu = jnp.mean(z, axis=-1, keepdims=True)
        c = z - mu
        var = jnp.mean(c * c, axis=-1, keepdims=True)
        zn = c * jax.lax.rsqrt(var + LN_EPS)                       # f32
        # Affine + LeakyReLU in the epilogue dtype (bf16 on v6e/v7x, f32 on v5e).
        a = zn.astype(EPILOGUE_DTYPE) * g_ref[...] + be_ref[...]
        a = jnp.maximum(a, a * LEAKY_SLOPE)                        # slope in (0,1)
        return a.astype(jnp.bfloat16)                              # feed next MXU pass

    h = x_ref[...].astype(jnp.bfloat16)                            # (TB, 784), cast in VMEM
    h = hidden_block(h, w1_ref, b1_ref, g1_ref, be1_ref)           # (TB, 512)
    h = hidden_block(h, w2_ref, b2_ref, g2_ref, be2_ref)           # (TB, 256)
    h = hidden_block(h, w3_ref, b3_ref, g3_ref, be3_ref)           # (TB, 128)
    # Final Linear (out_features = 1): VPU multiply + lane reduce -> compact (TB, 1) store.
    logits = jnp.sum(h.astype(jnp.float32) * w4_ref[...], axis=-1, keepdims=True)
    o_ref[...] = logits + b4_ref[...]                              # (TB, 1) f32


def init_params(key):
    """Deterministic init mimicking nn.Linear defaults. Weights stored (in, out);
    LayerNorm gamma=1, beta=0 (PyTorch defaults)."""
    params = []
    dims = LAYERS_DIM
    for i in range(len(dims) - 1):
        d_in, d_out = dims[i], dims[i + 1]
        key, kw, kb = jax.random.split(key, 3)
        bound = 1.0 / jnp.sqrt(d_in)
        w = jax.random.uniform(kw, (d_in, d_out), jnp.float32, -bound, bound)
        b = jax.random.uniform(kb, (1, d_out), jnp.float32, -bound, bound)
        if i != len(dims) - 2:
            gamma = jnp.ones((1, d_out), jnp.float32)
            beta = jnp.zeros((1, d_out), jnp.float32)
            params.append((w, b, gamma, beta))
        else:
            params.append((w, b))
    return params


def pack_params(params):
    """One-time packing: matmul weights -> bf16, LN params -> epilogue dtype,
    final (128,1) weight stored as an f32 (1,128) row for the lane-reduce epilogue."""
    (w1, b1, g1, be1), (w2, b2, g2, be2), (w3, b3, g3, be3), (w4, b4) = params
    ep = EPILOGUE_DTYPE
    return (
        w1.astype(jnp.bfloat16), b1, g1.astype(ep), be1.astype(ep),
        w2.astype(jnp.bfloat16), b2, g2.astype(ep), be2.astype(ep),
        w3.astype(jnp.bfloat16), b3, g3.astype(ep), be3.astype(ep),
        w4.T.astype(jnp.float32),                                   # (1, 128)
        b4,                                                         # (1, 1)
    )


@jax.jit
def discriminator_forward(x_nchw, packed_params):
    """x_nchw: (B, C, H, W) float32 -> (B, 1) float32."""
    B = x_nchw.shape[0]
    x2d = x_nchw.reshape(B, D_IN)          # metadata-only reshape; no cast, no feature pad

    # Batch tile: multiple of 16 (bf16 sublane packing), >=2 balanced tiles when B allows
    # (so v7x's parallel axis uses both TensorCores), capped at TB_MAX.
    tb = min(TB_MAX, _round_up(pl.cdiv(B, 2), 16))
    b_pad = _round_up(B, tb)
    if b_pad != B:
        x2d = jnp.pad(x2d, ((0, b_pad - B), (0, 0)))
    n_steps = b_pad // tb

    def const_spec(arr):
        # Full array, VMEM-resident across the batch grid.
        return pl.BlockSpec(arr.shape, lambda i: (0, 0))

    (w1, b1, g1, be1, w2, b2, g2, be2, w3, b3, g3, be3, w4, b4) = packed_params

    in_specs = [
        pl.BlockSpec((tb, D_IN), lambda i: (i, 0)),   # full last dim -> legal block
        const_spec(w1), const_spec(b1), const_spec(g1), const_spec(be1),
        const_spec(w2), const_spec(b2), const_spec(g2), const_spec(be2),
        const_spec(w3), const_spec(b3), const_spec(g3), const_spec(be3),
        const_spec(w4), const_spec(b4),
    ]

    flops = 2 * b_pad * (D_IN * 512 + 512 * 256 + 256 * 128 + 128 * 1)
    param_bytes = sum(int(p.size) * p.dtype.itemsize for p in packed_params)
    bytes_accessed = b_pad * D_IN * x2d.dtype.itemsize + param_bytes + b_pad * 4

    out = pl.pallas_call(
        _disc_kernel,
        out_shape=jax.ShapeDtypeStruct((b_pad, 1), jnp.float32),
        grid=(n_steps,),
        in_specs=in_specs,
        out_specs=pl.BlockSpec((tb, 1), lambda i: (i, 0)),
        compiler_params=pltpu.CompilerParams(
            dimension_semantics=("parallel",),        # v7x: shard batch tiles over 2 TCs
            vmem_limit_bytes=48 << 20,                # headroom for tb=1024 f32 input block
        ),
        cost_estimate=pl.CostEstimate(
            flops=flops,
            transcendentals=3 * b_pad,                # one rsqrt per row per hidden layer
            bytes_accessed=bytes_accessed,
        ),
    )(x2d, *packed_params)

    return out[:B]


def _reference_forward(x_nchw, params):
    """Pure-JAX f32 reference for sanity checking."""
    B = x_nchw.shape[0]
    h = x_nchw.reshape(B, D_IN).astype(jnp.float32)
    for i, p in enumerate(params):
        if i != len(params) - 1:
            w, b, g, be = p
            z = h @ w + b
            mu = jnp.mean(z, axis=-1, keepdims=True)
            var = jnp.mean((z - mu) ** 2, axis=-1, keepdims=True)
            zn = (z - mu) / jnp.sqrt(var + LN_EPS) * g + be
            h = jnp.where(zn > 0, zn, LEAKY_SLOPE * zn)
        else:
            w, b = p
            h = h @ w + b
    return h


if __name__ == "__main__":
    key = jax.random.PRNGKey(0)
    kx, kp = jax.random.split(key)

    B = 2
    x = jax.random.normal(kx, (B, IM_CHANNELS, IM_SIZE[0], IM_SIZE[1]), jnp.float32)
    params = init_params(kp)
    packed = pack_params(params)

    out = discriminator_forward(x, packed)
    out = jax.block_until_ready(out)

    ref = _reference_forward(x, params)
    assert out.shape == (B, 1), out.shape
    # bf16 MXU operands (+ bf16 epilogue on v6e/v7x) shift results ~1e-2 vs f32 reference.
    assert jnp.allclose(out, ref, atol=5e-2, rtol=5e-2), (out, ref)

    print("KERNEL_OK")
</pallas_src>

<mosaic_0001>
module attributes {stable_mosaic.version = 11 : i64} {
  func.func @_disc_kernel(%arg0: i32, %arg1: memref<16x784xf32, #tpu.memory_space<vmem>>, %arg2: memref<784x512xbf16, #tpu.memory_space<vmem>>, %arg3: memref<1x512xf32, #tpu.memory_space<vmem>>, %arg4: memref<1x512xbf16, #tpu.memory_space<vmem>>, %arg5: memref<1x512xbf16, #tpu.memory_space<vmem>>, %arg6: memref<512x256xbf16, #tpu.memory_space<vmem>>, %arg7: memref<1x256xf32, #tpu.memory_space<vmem>>, %arg8: memref<1x256xbf16, #tpu.memory_space<vmem>>, %arg9: memref<1x256xbf16, #tpu.memory_space<vmem>>, %arg10: memref<256x128xbf16, #tpu.memory_space<vmem>>, %arg11: memref<1x128xf32, #tpu.memory_space<vmem>>, %arg12: memref<1x128xbf16, #tpu.memory_space<vmem>>, %arg13: memref<1x128xbf16, #tpu.memory_space<vmem>>, %arg14: memref<1x128xf32, #tpu.memory_space<vmem>>, %arg15: memref<1x1xf32, #tpu.memory_space<vmem>>, %arg16: memref<16x1xf32, #tpu.memory_space<vmem>>) attributes {dimension_semantics = [#tpu.dimension_semantics<parallel>], iteration_bounds = array<i64: 1>, scalar_prefetch = 0 : i64, scratch_operands = 0 : i64, tpu.core_type = #tpu.core_type<tc>, window_params = [{transform_indices = @transform_0, window_bounds = array<i64: 16, 784>}, {pipeline_mode = #tpu.pipeline_mode<synchronous>, transform_indices = @transform_1, window_bounds = array<i64: 784, 512>}, {pipeline_mode = #tpu.pipeline_mode<synchronous>, transform_indices = @transform_2, window_bounds = array<i64: 1, 512>}, {pipeline_mode = #tpu.pipeline_mode<synchronous>, transform_indices = @transform_3, window_bounds = array<i64: 1, 512>}, {pipeline_mode = #tpu.pipeline_mode<synchronous>, transform_indices = @transform_4, window_bounds = array<i64: 1, 512>}, {pipeline_mode = #tpu.pipeline_mode<synchronous>, transform_indices = @transform_5, window_bounds = array<i64: 512, 256>}, {pipeline_mode = #tpu.pipeline_mode<synchronous>, transform_indices = @transform_6, window_bounds = array<i64: 1, 256>}, {pipeline_mode = #tpu.pipeline_mode<synchronous>, transform_indices = @transform_7, window_bounds = array<i64: 1, 256>}, {pipeline_mode = #tpu.pipeline_mode<synchronous>, transform_indices = @transform_8, window_bounds = array<i64: 1, 256>}, {pipeline_mode = #tpu.pipeline_mode<synchronous>, transform_indices = @transform_9, window_bounds = array<i64: 256, 128>}, {pipeline_mode = #tpu.pipeline_mode<synchronous>, transform_indices = @transform_10, window_bounds = array<i64: 1, 128>}, {pipeline_mode = #tpu.pipeline_mode<synchronous>, transform_indices = @transform_11, window_bounds = array<i64: 1, 128>}, {pipeline_mode = #tpu.pipeline_mode<synchronous>, transform_indices = @transform_12, window_bounds = array<i64: 1, 128>}, {pipeline_mode = #tpu.pipeline_mode<synchronous>, transform_indices = @transform_13, window_bounds = array<i64: 1, 128>}, {pipeline_mode = #tpu.pipeline_mode<synchronous>, transform_indices = @transform_14, window_bounds = array<i64: 1, 1>}, {transform_indices = @transform_15, window_bounds = array<i64: 16, 1>}]} {
    %c0 = arith.constant 0 : index
    %c0_0 = arith.constant 0 : index
    %0 = vector.load %arg1[%c0, %c0_0] : memref<16x784xf32, #tpu.memory_space<vmem>>, vector<16x784xf32>
    %1 = arith.truncf %0 : vector<16x784xf32> to vector<16x784xbf16>
    %c0_1 = arith.constant 0 : index
    %c0_2 = arith.constant 0 : index
    %2 = vector.load %arg2[%c0_1, %c0_2] : memref<784x512xbf16, #tpu.memory_space<vmem>>, vector<784x512xbf16>
    %cst = arith.constant dense<0.000000e+00> : vector<16x512xf32>
    %3 = tpu.matmul %1, %2, %cst {dimension_numbers = #tpu.dot_dimension_numbers<[1], [0], [0], [1], [0, 0, 1, 1], [], []>} : vector<16x784xbf16>, vector<784x512xbf16>, vector<16x512xf32> -> vector<16x512xf32>
    %c0_3 = arith.constant 0 : index
    %c0_4 = arith.constant 0 : index
    %4 = vector.load %arg3[%c0_3, %c0_4] : memref<1x512xf32, #tpu.memory_space<vmem>>, vector<1x512xf32>
    %5 = vector.broadcast %4 : vector<1x512xf32> to vector<16x512xf32>
    %6 = arith.addf %3, %5 : vector<16x512xf32>
    %cst_5 = arith.constant dense<0.000000e+00> : vector<16xf32>
    %7 = vector.multi_reduction <add>, %6, %cst_5 [1] : vector<16x512xf32> to vector<16xf32>
    %8 = vector.shape_cast %7 : vector<16xf32> to vector<16x1xf32>
    %cst_6 = arith.constant 5.120000e+02 : f32
    %9 = vector.broadcast %cst_6 : f32 to vector<16x1xf32>
    %10 = arith.divf %8, %9 : vector<16x1xf32>
    %11 = vector.broadcast %10 : vector<16x1xf32> to vector<16x512xf32>
    %12 = arith.subf %6, %11 : vector<16x512xf32>
    %13 = arith.mulf %12, %12 : vector<16x512xf32>
    %cst_7 = arith.constant dense<0.000000e+00> : vector<16xf32>
    %14 = vector.multi_reduction <add>, %13, %cst_7 [1] : vector<16x512xf32> to vector<16xf32>
    %15 = vector.shape_cast %14 : vector<16xf32> to vector<16x1xf32>
    %cst_8 = arith.constant 5.120000e+02 : f32
    %16 = vector.broadcast %cst_8 : f32 to vector<16x1xf32>
    %17 = arith.divf %15, %16 : vector<16x1xf32>
    %cst_9 = arith.constant 9.99999974E-6 : f32
    %18 = vector.broadcast %cst_9 : f32 to vector<16x1xf32>
    %19 = arith.addf %17, %18 : vector<16x1xf32>
    %20 = math.rsqrt %19 : vector<16x1xf32>
    %21 = vector.broadcast %20 : vector<16x1xf32> to vector<16x512xf32>
    %22 = arith.mulf %12, %21 : vector<16x512xf32>
    %23 = arith.truncf %22 : vector<16x512xf32> to vector<16x512xbf16>
    %c0_10 = arith.constant 0 : index
    %c0_11 = arith.constant 0 : index
    %24 = vector.load %arg4[%c0_10, %c0_11] : memref<1x512xbf16, #tpu.memory_space<vmem>>, vector<1x512xbf16>
    %25 = vector.broadcast %24 : vector<1x512xbf16> to vector<16x512xbf16>
    %26 = arith.mulf %23, %25 : vector<16x512xbf16>
    %c0_12 = arith.constant 0 : index
    %c0_13 = arith.constant 0 : index
    %27 = vector.load %arg5[%c0_12, %c0_13] : memref<1x512xbf16, #tpu.memory_space<vmem>>, vector<1x512xbf16>
    %28 = vector.broadcast %27 : vector<1x512xbf16> to vector<16x512xbf16>
    %29 = arith.addf %26, %28 : vector<16x512xbf16>
    %cst_14 = arith.constant 1.000980e-02 : bf16
    %30 = vector.broadcast %cst_14 : bf16 to vector<16x512xbf16>
    %31 = arith.mulf %29, %30 : vector<16x512xbf16>
    %32 = arith.maximumf %29, %31 : vector<16x512xbf16>
    %c0_15 = arith.constant 0 : index
    %c0_16 = arith.constant 0 : index
    %33 = vector.load %arg6[%c0_15, %c0_16] : memref<512x256xbf16, #tpu.memory_space<vmem>>, vector<512x256xbf16>
    %cst_17 = arith.constant dense<0.000000e+00> : vector<16x256xf32>
    %34 = tpu.matmul %32, %33, %cst_17 {dimension_numbers = #tpu.dot_dimension_numbers<[1], [0], [0], [1], [0, 0, 1, 1], [], []>} : vector<16x512xbf16>, vector<512x256xbf16>, vector<16x256xf32> -> vector<16x256xf32>
    %c0_18 = arith.constant 0 : index
    %c0_19 = arith.constant 0 : index
    %35 = vector.load %arg7[%c0_18, %c0_19] : memref<1x256xf32, #tpu.memory_space<vmem>>, vector<1x256xf32>
    %36 = vector.broadcast %35 : vector<1x256xf32> to vector<16x256xf32>
    %37 = arith.addf %34, %36 : vector<16x256xf32>
    %cst_20 = arith.constant dense<0.000000e+00> : vector<16xf32>
    %38 = vector.multi_reduction <add>, %37, %cst_20 [1] : vector<16x256xf32> to vector<16xf32>
    %39 = vector.shape_cast %38 : vector<16xf32> to vector<16x1xf32>
    %cst_21 = arith.constant 2.560000e+02 : f32
    %40 = vector.broadcast %cst_21 : f32 to vector<16x1xf32>
    %41 = arith.divf %39, %40 : vector<16x1xf32>
    %42 = vector.broadcast %41 : vector<16x1xf32> to vector<16x256xf32>
    %43 = arith.subf %37, %42 : vector<16x256xf32>
    %44 = arith.mulf %43, %43 : vector<16x256xf32>
    %cst_22 = arith.constant dense<0.000000e+00> : vector<16xf32>
    %45 = vector.multi_reduction <add>, %44, %cst_22 [1] : vector<16x256xf32> to vector<16xf32>
    %46 = vector.shape_cast %45 : vector<16xf32> to vector<16x1xf32>
    %cst_23 = arith.constant 2.560000e+02 : f32
    %47 = vector.broadcast %cst_23 : f32 to vector<16x1xf32>
    %48 = arith.divf %46, %47 : vector<16x1xf32>
    %cst_24 = arith.constant 9.99999974E-6 : f32
    %49 = vector.broadcast %cst_24 : f32 to vector<16x1xf32>
    %50 = arith.addf %48, %49 : vector<16x1xf32>
    %51 = math.rsqrt %50 : vector<16x1xf32>
    %52 = vector.broadcast %51 : vector<16x1xf32> to vector<16x256xf32>
    %53 = arith.mulf %43, %52 : vector<16x256xf32>
    %54 = arith.truncf %53 : vector<16x256xf32> to vector<16x256xbf16>
    %c0_25 = arith.constant 0 : index
    %c0_26 = arith.constant 0 : index
    %55 = vector.load %arg8[%c0_25, %c0_26] : memref<1x256xbf16, #tpu.memory_space<vmem>>, vector<1x256xbf16>
    %56 = vector.broadcast %55 : vector<1x256xbf16> to vector<16x256xbf16>
    %57 = arith.mulf %54, %56 : vector<16x256xbf16>
    %c0_27 = arith.constant 0 : index
    %c0_28 = arith.constant 0 : index
    %58 = vector.load %arg9[%c0_27, %c0_28] : memref<1x256xbf16, #tpu.memory_space<vmem>>, vector<1x256xbf16>
    %59 = vector.broadcast %58 : vector<1x256xbf16> to vector<16x256xbf16>
    %60 = arith.addf %57, %59 : vector<16x256xbf16>
    %cst_29 = arith.constant 1.000980e-02 : bf16
    %61 = vector.broadcast %cst_29 : bf16 to vector<16x256xbf16>
    %62 = arith.mulf %60, %61 : vector<16x256xbf16>
    %63 = arith.maximumf %60, %62 : vector<16x256xbf16>
    %c0_30 = arith.constant 0 : index
    %c0_31 = arith.constant 0 : index
    %64 = vector.load %arg10[%c0_30, %c0_31] : memref<256x128xbf16, #tpu.memory_space<vmem>>, vector<256x128xbf16>
    %cst_32 = arith.constant dense<0.000000e+00> : vector<16x128xf32>
    %65 = tpu.matmul %63, %64, %cst_32 {dimension_numbers = #tpu.dot_dimension_numbers<[1], [0], [0], [1], [0, 0, 1, 1], [], []>} : vector<16x256xbf16>, vector<256x128xbf16>, vector<16x128xf32> -> vector<16x128xf32>
    %c0_33 = arith.constant 0 : index
    %c0_34 = arith.constant 0 : index
    %66 = vector.load %arg11[%c0_33, %c0_34] : memref<1x128xf32, #tpu.memory_space<vmem>>, vector<1x128xf32>
    %67 = vector.broadcast %66 : vector<1x128xf32> to vector<16x128xf32>
    %68 = arith.addf %65, %67 : vector<16x128xf32>
    %cst_35 = arith.constant dense<0.000000e+00> : vector<16xf32>
    %69 = vector.multi_reduction <add>, %68, %cst_35 [1] : vector<16x128xf32> to vector<16xf32>
    %70 = vector.shape_cast %69 : vector<16xf32> to vector<16x1xf32>
    %cst_36 = arith.constant 1.280000e+02 : f32
    %71 = vector.broadcast %cst_36 : f32 to vector<16x1xf32>
    %72 = arith.divf %70, %71 : vector<16x1xf32>
    %73 = vector.broadcast %72 : vector<16x1xf32> to vector<16x128xf32>
    %74 = arith.subf %68, %73 : vector<16x128xf32>
    %75 = arith.mulf %74, %74 : vector<16x128xf32>
    %cst_37 = arith.constant dense<0.000000e+00> : vector<16xf32>
    %76 = vector.multi_reduction <add>, %75, %cst_37 [1] : vector<16x128xf32> to vector<16xf32>
    %77 = vector.shape_cast %76 : vector<16xf32> to vector<16x1xf32>
    %cst_38 = arith.constant 1.280000e+02 : f32
    %78 = vector.broadcast %cst_38 : f32 to vector<16x1xf32>
    %79 = arith.divf %77, %78 : vector<16x1xf32>
    %cst_39 = arith.constant 9.99999974E-6 : f32
    %80 = vector.broadcast %cst_39 : f32 to vector<16x1xf32>
    %81 = arith.addf %79, %80 : vector<16x1xf32>
    %82 = math.rsqrt %81 : vector<16x1xf32>
    %83 = vector.broadcast %82 : vector<16x1xf32> to vector<16x128xf32>
    %84 = arith.mulf %74, %83 : vector<16x128xf32>
    %85 = arith.truncf %84 : vector<16x128xf32> to vector<16x128xbf16>
    %c0_40 = arith.constant 0 : index
    %c0_41 = arith.constant 0 : index
    %86 = vector.load %arg12[%c0_40, %c0_41] : memref<1x128xbf16, #tpu.memory_space<vmem>>, vector<1x128xbf16>
    %87 = vector.broadcast %86 : vector<1x128xbf16> to vector<16x128xbf16>
    %88 = arith.mulf %85, %87 : vector<16x128xbf16>
    %c0_42 = arith.constant 0 : index
    %c0_43 = arith.constant 0 : index
    %89 = vector.load %arg13[%c0_42, %c0_43] : memref<1x128xbf16, #tpu.memory_space<vmem>>, vector<1x128xbf16>
    %90 = vector.broadcast %89 : vector<1x128xbf16> to vector<16x128xbf16>
    %91 = arith.addf %88, %90 : vector<16x128xbf16>
    %cst_44 = arith.constant 1.000980e-02 : bf16
    %92 = vector.broadcast %cst_44 : bf16 to vector<16x128xbf16>
    %93 = arith.mulf %91, %92 : vector<16x128xbf16>
    %94 = arith.maximumf %91, %93 : vector<16x128xbf16>
    %95 = arith.extf %94 : vector<16x128xbf16> to vector<16x128xf32>
    %c0_45 = arith.constant 0 : index
    %c0_46 = arith.constant 0 : index
    %96 = vector.load %arg14[%c0_45, %c0_46] : memref<1x128xf32, #tpu.memory_space<vmem>>, vector<1x128xf32>
    %97 = vector.broadcast %96 : vector<1x128xf32> to vector<16x128xf32>
    %98 = arith.mulf %95, %97 : vector<16x128xf32>
    %cst_47 = arith.constant dense<0.000000e+00> : vector<16xf32>
    %99 = vector.multi_reduction <add>, %98, %cst_47 [1] : vector<16x128xf32> to vector<16xf32>
    %100 = vector.shape_cast %99 : vector<16xf32> to vector<16x1xf32>
    %c0_48 = arith.constant 0 : index
    %c0_49 = arith.constant 0 : index
    %101 = vector.load %arg15[%c0_48, %c0_49] : memref<1x1xf32, #tpu.memory_space<vmem>>, vector<1x1xf32>
    %102 = vector.broadcast %101 : vector<1x1xf32> to vector<16x1xf32>
    %103 = arith.addf %100, %102 : vector<16x1xf32>
    %c0_50 = arith.constant 0 : index
    %c0_51 = arith.constant 0 : index
    %104 = vector.load %arg16[%c0_50, %c0_51] : memref<16x1xf32, #tpu.memory_space<vmem>>, vector<16x1xf32>
    tpu.vector_store %arg16[%c0_50, %c0_51], %103 {strides = array<i32>} : memref<16x1xf32, #tpu.memory_space<vmem>>, vector<16x1xf32>,
    return
  }
  func.func @transform_0(%arg0: i32) -> (i32, i32) {
    %c0_i32 = arith.constant 0 : i32
    %c0_i32_0 = arith.constant 0 : i32
    return %arg0, %c0_i32 : i32, i32
  }
  func.func @transform_1(%arg0: i32) -> (i32, i32) {
    %c0_i32 = arith.constant 0 : i32
    %c0_i32_0 = arith.constant 0 : i32
    %c0_i32_1 = arith.constant 0 : i32
    return %c0_i32, %c0_i32_0 : i32, i32
  }
  func.func @transform_2(%arg0: i32) -> (i32, i32) {
    %c0_i32 = arith.constant 0 : i32
    %c0_i32_0 = arith.constant 0 : i32
    %c0_i32_1 = arith.constant 0 : i32
    return %c0_i32, %c0_i32_0 : i32, i32
  }
  func.func @transform_3(%arg0: i32) -> (i32, i32) {
    %c0_i32 = arith.constant 0 : i32
    %c0_i32_0 = arith.constant 0 : i32
    %c0_i32_1 = arith.constant 0 : i32
    return %c0_i32, %c0_i32_0 : i32, i32
  }
  func.func @transform_4(%arg0: i32) -> (i32, i32) {
    %c0_i32 = arith.constant 0 : i32
    %c0_i32_0 = arith.constant 0 : i32
    %c0_i32_1 = arith.constant 0 : i32
    return %c0_i32, %c0_i32_0 : i32, i32
  }
  func.func @transform_5(%arg0: i32) -> (i32, i32) {
    %c0_i32 = arith.constant 0 : i32
    %c0_i32_0 = arith.constant 0 : i32
    %c0_i32_1 = arith.constant 0 : i32
    return %c0_i32, %c0_i32_0 : i32, i32
  }
  func.func @transform_6(%arg0: i32) -> (i32, i32) {
    %c0_i32 = arith.constant 0 : i32
    %c0_i32_0 = arith.constant 0 : i32
    %c0_i32_1 = arith.constant 0 : i32
    return %c0_i32, %c0_i32_0 : i32, i32
  }
  func.func @transform_7(%arg0: i32) -> (i32, i32) {
    %c0_i32 = arith.constant 0 : i32
    %c0_i32_0 = arith.constant 0 : i32
    %c0_i32_1 = arith.constant 0 : i32
    return %c0_i32, %c0_i32_0 : i32, i32
  }
  func.func @transform_8(%arg0: i32) -> (i32, i32) {
    %c0_i32 = arith.constant 0 : i32
    %c0_i32_0 = arith.constant 0 : i32
    %c0_i32_1 = arith.constant 0 : i32
    return %c0_i32, %c0_i32_0 : i32, i32
  }
  func.func @transform_9(%arg0: i32) -> (i32, i32) {
    %c0_i32 = arith.constant 0 : i32
    %c0_i32_0 = arith.constant 0 : i32
    %c0_i32_1 = arith.constant 0 : i32
    return %c0_i32, %c0_i32_0 : i32, i32
  }
  func.func @transform_10(%arg0: i32) -> (i32, i32) {
    %c0_i32 = arith.constant 0 : i32
    %c0_i32_0 = arith.constant 0 : i32
    %c0_i32_1 = arith.constant 0 : i32
    return %c0_i32, %c0_i32_0 : i32, i32
  }
  func.func @transform_11(%arg0: i32) -> (i32, i32) {
    %c0_i32 = arith.constant 0 : i32
    %c0_i32_0 = arith.constant 0 : i32
    %c0_i32_1 = arith.constant 0 : i32
    return %c0_i32, %c0_i32_0 : i32, i32
  }
  func.func @transform_12(%arg0: i32) -> (i32, i32) {
    %c0_i32 = arith.constant 0 : i32
    %c0_i32_0 = arith.constant 0 : i32
    %c0_i32_1 = arith.constant 0 : i32
    return %c0_i32, %c0_i32_0 : i32, i32
  }
  func.func @transform_13(%arg0: i32) -> (i32, i32) {
    %c0_i32 = arith.constant 0 : i32
    %c0_i32_0 = arith.constant 0 : i32
    %c0_i32_1 = arith.constant 0 : i32
    return %c0_i32, %c0_i32_0 : i32, i32
  }
  func.func @transform_14(%arg0: i32) -> (i32, i32) {
    %c0_i32 = arith.constant 0 : i32
    %c0_i32_0 = arith.constant 0 : i32
    %c0_i32_1 = arith.constant 0 : i32
    return %c0_i32, %c0_i32_0 : i32, i32
  }
  func.func @transform_15(%arg0: i32) -> (i32, i32) {
    %c0_i32 = arith.constant 0 : i32
    %c0_i32_0 = arith.constant 0 : i32
    return %arg0, %c0_i32 : i32, i32
  }
}

</mosaic_0001>

<llo_original>
// kernel: discriminator_forward.1
$region0: #{discriminator_forward.1}
  #allocation0 [shape = 'u32[]', space=smem, size = 0x4, offset = 0x4, fixed_abs, tag = 'smem constant byte address 0x4 - core index']
  #allocation1 [shape = 'u32[72,128]{1,0:T(1,128)}', space=vmem, size = 0x9000, scoped, tag = 'internal scratch']
  #allocation2 [shape = 'f32[1,1]{1,0:T(1,128)S(1)}', space=vmem, size = 0x200, scoped, tag = 'scoped memory for discriminator_forward.1']
  %s0 = inlined_call_operand.vmem [shape: f32[16,784], index: 0, kind: input, shape index: {}]
  %s1 = inlined_call_operand.hbm [shape: bf16[784,512], index: 1, kind: input, shape index: {}]
  %s2 = inlined_call_operand.vmem [shape: f32[1,512], index: 2, kind: input, shape index: {}]
  %s3 = inlined_call_operand.vmem [shape: bf16[1,512], index: 3, kind: input, shape index: {}]
  %s4 = inlined_call_operand.vmem [shape: bf16[1,512], index: 4, kind: input, shape index: {}]
  %s5 = inlined_call_operand.hbm [shape: bf16[512,256], index: 5, kind: input, shape index: {}]
  %s6 = inlined_call_operand.vmem [shape: f32[1,256], index: 6, kind: input, shape index: {}]
  %s7 = inlined_call_operand.vmem [shape: bf16[1,256], index: 7, kind: input, shape index: {}]
  %s8 = inlined_call_operand.vmem [shape: bf16[1,256], index: 8, kind: input, shape index: {}]
  %s9 = inlined_call_operand.vmem [shape: bf16[256,128], index: 9, kind: input, shape index: {}]
  %s10 = inlined_call_operand.vmem [shape: f32[1,128], index: 10, kind: input, shape index: {}]
  %s11 = inlined_call_operand.vmem [shape: bf16[1,128], index: 11, kind: input, shape index: {}]
  %s12 = inlined_call_operand.vmem [shape: bf16[1,128], index: 12, kind: input, shape index: {}]
  %s13 = inlined_call_operand.vmem [shape: f32[1,128], index: 13, kind: input, shape index: {}]
  %s14 = inlined_call_operand.<no memory space> [shape: f32[1,1], index: 14, kind: input, shape index: {}]
  %s15 = inlined_call_operand.vmem [shape: f32[16,1], index: 15, kind: output, shape index: {}]
  %s16 = sld [smem:[#allocation0]]
  $region78: #{discriminator_forward.1} parent=0
    _
  %s18 = ssub.s32 1, %s16
  %s19 = scalar_select 0, %s18, %s16
  %v20 = vstv %s14
  %21 = vst [vmem:[#allocation2] sm:$0x1] %v20
  $region1: #{discriminator_forward.1} parent=0
    #allocation3 [shape = 'u8[802816]{0}', space=vmem, size = 0xc4000, scoped, tag = 'input window, operand 1, single buffered']
    #allocation4 [shape = 's32[1]{0}', space=sflag, size = 0x4, scoped, tag = 'scoped memory for discriminator_forward.1']
    #allocation5 [shape = 'u8[262144]{0}', space=vmem, size = 0x40000, scoped, tag = 'input window, operand 5, single buffered']
    #allocation6 [shape = 's32[1]{0}', space=sflag, size = 0x4, scoped, tag = 'scoped memory for discriminator_forward.1']
    %22 = vsyncpa [#allocation4], 0
    %23 = vsyncpa [#allocation6], 0
    // Predicated region
    $region2: #{discriminator_forward.1} parent=1 // pred_check
      _
    $region3: #{discriminator_forward.1} parent=1 // pred_check_branch
      %25 = sbr.rel (0) target = $region5
    $region4: #{discriminator_forward.1} parent=1 // pred_region
      _
    $region5: #{discriminator_forward.1} parent=1 // pred_fallthru
      _
    // Predicated region
    $region6: #{discriminator_forward.1} parent=1 // pred_check
      _
    $region7: #{discriminator_forward.1} parent=1 // pred_check_branch
      %27 = sbr.rel (0) target = $region9
    $region8: #{discriminator_forward.1} parent=1 // pred_region
      %29 = vsyncadd [#allocation4], 0
      %s30 = sshll.u32 %s1, 4
      %s31 = int_to_ptr.hbm [resolvable:$true] %s30
      %s32 = sshll.u32 [#allocation3], 4
      %s33 = int_to_ptr.vmem [resolvable:$true] %s32
      %38 = dma.hbm_to_vmem [thread:$0]  %s31, 25088, %s33, [#allocation4], 256, 256, 16
    $region9: #{discriminator_forward.1} parent=1 // pred_fallthru
      _
    // Predicated region
    $region10: #{discriminator_forward.1} parent=1 // pred_check
      _
    $region11: #{discriminator_forward.1} parent=1 // pred_check_branch
      %40 = sbr.rel (0) target = $region13
    $region12: #{discriminator_forward.1} parent=1 // pred_region
      _
    $region13: #{discriminator_forward.1} parent=1 // pred_fallthru
      _
    // Predicated region
    $region14: #{discriminator_forward.1} parent=1 // pred_check
      _
    $region15: #{discriminator_forward.1} parent=1 // pred_check_branch
      %42 = sbr.rel (0) target = $region17
    $region16: #{discriminator_forward.1} parent=1 // pred_region
      _
    $region17: #{discriminator_forward.1} parent=1 // pred_fallthru
      _
    // Predicated region
    $region18: #{discriminator_forward.1} parent=1 // pred_check
      _
    $region19: #{discriminator_forward.1} parent=1 // pred_check_branch
      %44 = sbr.rel (0) target = $region21
    $region20: #{discriminator_forward.1} parent=1 // pred_region
      _
    $region21: #{discriminator_forward.1} parent=1 // pred_fallthru
      _
    // Predicated region
    $region22: #{discriminator_forward.1} parent=1 // pred_check
      _
    $region23: #{discriminator_forward.1} parent=1 // pred_check_branch
      %46 = sbr.rel (0) target = $region25
    $region24: #{discriminator_forward.1} parent=1 // pred_region
      %48 = vsyncadd [#allocation6], 0
      %s49 = sshll.u32 %s5, 4
      %s50 = int_to_ptr.hbm [resolvable:$true] %s49
      %s51 = sshll.u32 [#allocation5], 4
      %s52 = int_to_ptr.vmem [resolvable:$true] %s51
      %57 = dma.hbm_to_vmem [thread:$0]  %s50, 8192, %s52, [#allocation6], 128, 128, 8
    $region25: #{discriminator_forward.1} parent=1 // pred_fallthru
      _
    // Predicated region
    $region26: #{discriminator_forward.1} parent=1 // pred_check
      _
    $region27: #{discriminator_forward.1} parent=1 // pred_check_branch
      %59 = sbr.rel (0) target = $region29
    $region28: #{discriminator_forward.1} parent=1 // pred_region
      _
    $region29: #{discriminator_forward.1} parent=1 // pred_fallthru
      _
    // Predicated region
    $region30: #{discriminator_forward.1} parent=1 // pred_check
      _
    $region31: #{discriminator_forward.1} parent=1 // pred_check_branch
      %61 = sbr.rel (0) target = $region33
    $region32: #{discriminator_forward.1} parent=1 // pred_region
      _
    $region33: #{discriminator_forward.1} parent=1 // pred_fallthru
      _
    // Predicated region
    $region34: #{discriminator_forward.1} parent=1 // pred_check
      _
    $region35: #{discriminator_forward.1} parent=1 // pred_check_branch
      %63 = sbr.rel (0) target = $region37
    $region36: #{discriminator_forward.1} parent=1 // pred_region
      _
    $region37: #{discriminator_forward.1} parent=1 // pred_fallthru
      _
    // Predicated region
    $region38: #{discriminator_forward.1} parent=1 // pred_check
      _
    $region39: #{discriminator_forward.1} parent=1 // pred_check_branch
      %65 = sbr.rel (0) target = $region41
    $region40: #{discriminator_forward.1} parent=1 // pred_region
      _
    $region41: #{discriminator_forward.1} parent=1 // pred_fallthru
      _
    // Predicated region
    $region42: #{discriminator_forward.1} parent=1 // pred_check
      _
    $region43: #{discriminator_forward.1} parent=1 // pred_check_branch
      %67 = sbr.rel (0) target = $region45
    $region44: #{discriminator_forward.1} parent=1 // pred_region
      _
    $region45: #{discriminator_forward.1} parent=1 // pred_fallthru
      _
    // Predicated region
    $region46: #{discriminator_forward.1} parent=1 // pred_check
      _
    $region47: #{discriminator_forward.1} parent=1 // pred_check_branch
      %69 = sbr.rel (0) target = $region49
    $region48: #{discriminator_forward.1} parent=1 // pred_region
      _
    $region49: #{discriminator_forward.1} parent=1 // pred_fallthru
      _
    // Predicated region
    $region50: #{discriminator_forward.1} parent=1 // pred_check
      _
    $region51: #{discriminator_forward.1} parent=1 // pred_check_branch
      %71 = sbr.rel (0) target = $region53
    $region52: #{discriminator_forward.1} parent=1 // pred_region
      _
    $region53: #{discriminator_forward.1} parent=1 // pred_fallthru
      _
    // Predicated region
    $region54: #{discriminator_forward.1} parent=1 // pred_check
      _
    $region55: #{discriminator_forward.1} parent=1 // pred_check_branch
      %73 = sbr.rel (0) target = $region57
    $region56: #{discriminator_forward.1} parent=1 // pred_region
      _
    $region57: #{discriminator_forward.1} parent=1 // pred_fallthru
      _
    // Predicated region
    $region58: #{discriminator_forward.1} parent=1 // pred_check
      _
    $region59: #{discriminator_forward.1} parent=1 // pred_check_branch
      %75 = sbr.rel (0) target = $region61
    $region60: #{discriminator_forward.1} parent=1 // pred_region
      _
    $region61: #{discriminator_forward.1} parent=1 // pred_fallthru
      _
    // Predicated region
    $region62: #{discriminator_forward.1} parent=1 // pred_check
      _
    $region63: #{discriminator_forward.1} parent=1 // pred_check_branch
      %77 = sbr.rel (0) target = $region65
    $region64: #{discriminator_forward.1} parent=1 // pred_region
      %79 = dma.done [#allocation4], 25088
    $region65: #{discriminator_forward.1} parent=1 // pred_fallthru
      _
    // Predicated region
    $region66: #{discriminator_forward.1} parent=1 // pred_check
      _
    $region67: #{discriminator_forward.1} parent=1 // pred_check_branch
      %81 = sbr.rel (0) target = $region69
    $region68: #{discriminator_forward.1} parent=1 // pred_region
      %83 = dma.done [#allocation6], 8192
    $region69: #{discriminator_forward.1} parent=1 // pred_fallthru
      _
    %v85 = vld [vmem:[%s0] sm:$0xff]
    %v86 = vld [vmem:[%s0 + $0x8] sm:$0xff]
    %v87 = vld [vmem:[%s0 + $0x10] sm:$0xff]
    %v88 = vld [vmem:[%s0 + $0x18] sm:$0xff]
    %v89 = vld [vmem:[%s0 + $0x20] sm:$0xff]
    %v90 = vld [vmem:[%s0 + $0x28] sm:$0xff]
    %v91 = vld [vmem:[%s0 + $0x30] sm:$0xff]
    %v92 = vld [vmem:[%s0 + $0x38] sm:$0xff]
    %v93 = vld [vmem:[%s0 + $0x40] sm:$0xff]
    %v94 = vld [vmem:[%s0 + $0x48] sm:$0xff]
    %v95 = vld [vmem:[%s0 + $0x50] sm:$0xff]
    %v96 = vld [vmem:[%s0 + $0x58] sm:$0xff]
    %v97 = vld [vmem:[%s0 + $0x60] sm:$0xff]
    %v98 = vld [vmem:[%s0 + $0x68] sm:$0xff]
    %v99 = vpack.c.bf16 %v92, %v85
    %v100 = vpack.c.bf16 %v93, %v86
    %v101 = vpack.c.bf16 %v94, %v87
    %v102 = vpack.c.bf16 %v95, %v88
    %v103 = vpack.c.bf16 %v96, %v89
    %v104 = vpack.c.bf16 %v97, %v90
    %v105 = vpack.c.bf16 %v98, %v91
    %v106 = vld [vmem:[#allocation3] sm:$0xff]
    %v107 = vld [vmem:[#allocation3 + $0x8] sm:$0xff]
    %v108 = vld [vmem:[#allocation3 + $0x10] sm:$0xff]
    %v109 = vld [vmem:[#allocation3 + $0x18] sm:$0xff]
    %v110 = vld [vmem:[#allocation3 + $0x20] sm:$0xff]
    %v111 = vld [vmem:[#allocation3 + $0x28] sm:$0xff]
    %v112 = vld [vmem:[#allocation3 + $0x30] sm:$0xff]
    %v113 = vld [vmem:[#allocation3 + $0x38] sm:$0xff]
    %v114 = vld [vmem:[#allocation3 + $0x40] sm:$0xff]
    %v115 = vld [vmem:[#allocation3 + $0x48] sm:$0xff]
    %v116 = vld [vmem:[#allocation3 + $0x50] sm:$0xff]
    %v117 = vld [vmem:[#allocation3 + $0x58] sm:$0xff]
    %v118 = vld [vmem:[#allocation3 + $0x60] sm:$0xff]
    %v119 = vld [vmem:[#allocation3 + $0x68] sm:$0xff]
    %v120 = vld [vmem:[#allocation3 + $0x70] sm:$0xff]
    %v121 = vld [vmem:[#allocation3 + $0x78] sm:$0xff]
    %v122 = vld [vmem:[#allocation3 + $0x80] sm:$0xff]
    %v123 = vld [vmem:[#allocation3 + $0x88] sm:$0xff]
    %v124 = vld [vmem:[#allocation3 + $0x90] sm:$0xff]
    %v125 = vld [vmem:[#allocation3 + $0x98] sm:$0xff]
    %v126 = vld [vmem:[#allocation3 + $0xa0] sm:$0xff]
    %v127 = vld [vmem:[#allocation3 + $0xa8] sm:$0xff]
    %v128 = vld [vmem:[#allocation3 + $0xb0] sm:$0xff]
    %v129 = vld [vmem:[#allocation3 + $0xb8] sm:$0xff]
    %v130 = vld [vmem:[#allocation3 + $0xc0] sm:$0xff]
    %v131 = vld [vmem:[#allocation3 + $0xc8] sm:$0xff]
    %v132 = vld [vmem:[#allocation3 + $0xd0] sm:$0xff]
    %v133 = vld [vmem:[#allocation3 + $0xd8] sm:$0xff]
    %v134 = vld [vmem:[#allocation3 + $0xe0] sm:$0xff]
    %v135 = vld [vmem:[#allocation3 + $0xe8] sm:$0xff]
    %v136 = vld [vmem:[#allocation3 + $0xf0] sm:$0xff]
    %v137 = vld [vmem:[#allocation3 + $0xf8] sm:$0xff]
    %v138 = vld [vmem:[#allocation3 + $0x100] sm:$0xff]
    %v139 = vld [vmem:[#allocation3 + $0x108] sm:$0xff]
    %v140 = vld [vmem:[#allocation3 + $0x110] sm:$0xff]
    %v141 = vld [vmem:[#allocation3 + $0x118] sm:$0xff]
    %v142 = vld [vmem:[#allocation3 + $0x120] sm:$0xff]
    %v143 = vld [vmem:[#allocation3 + $0x128] sm:$0xff]
    %v144 = vld [vmem:[#allocation3 + $0x130] sm:$0xff]
    %v145 = vld [vmem:[#allocation3 + $0x138] sm:$0xff]
    %v146 = vld [vmem:[#allocation3 + $0x140] sm:$0xff]
    %v147 = vld [vmem:[#allocation3 + $0x148] sm:$0xff]
    %v148 = vld [vmem:[#allocation3 + $0x150] sm:$0xff]
    %v149 = vld [vmem:[#allocation3 + $0x158] sm:$0xff]
    %v150 = vld [vmem:[#allocation3 + $0x160] sm:$0xff]
    %v151 = vld [vmem:[#allocation3 + $0x168] sm:$0xff]
    %v152 = vld [vmem:[#allocation3 + $0x170] sm:$0xff]
    %v153 = vld [vmem:[#allocation3 + $0x178] sm:$0xff]
    %v154 = vld [vmem:[#allocation3 + $0x180] sm:$0xff]
    %v155 = vld [vmem:[#allocation3 + $0x188] sm:$0xff]
    %v156 = vld [vmem:[#allocation3 + $0x190] sm:$0xff]
    %v157 = vld [vmem:[#allocation3 + $0x198] sm:$0xff]
    %v158 = vld [vmem:[#allocation3 + $0x1a0] sm:$0xff]
    %v159 = vld [vmem:[#allocation3 + $0x1a8] sm:$0xff]
    %v160 = vld [vmem:[#allocation3 + $0x1b0] sm:$0xff]
    %v161 = vld [vmem:[#allocation3 + $0x1b8] sm:$0xff]
    %v162 = vld [vmem:[#allocation3 + $0x1c0] sm:$0xff]
    %v163 = vld [vmem:[#allocation3 + $0x1c8] sm:$0xff]
    %v164 = vld [vmem:[#allocation3 + $0x1d0] sm:$0xff]
    %v165 = vld [vmem:[#allocation3 + $0x1d8] sm:$0xff]
    %v166 = vld [vmem:[#allocation3 + $0x1e0] sm:$0xff]
    %v167 = vld [vmem:[#allocation3 + $0x1e8] sm:$0xff]
    %v168 = vld [vmem:[#allocation3 + $0x1f0] sm:$0xff]
    %v169 = vld [vmem:[#allocation3 + $0x1f8] sm:$0xff]
    %v170 = vld [vmem:[#allocation3 + $0x200] sm:$0xff]
    %v171 = vld [vmem:[#allocation3 + $0x208] sm:$0xff]
    %v172 = vld [vmem:[#allocation3 + $0x210] sm:$0xff]
    %v173 = vld [vmem:[#allocation3 + $0x218] sm:$0xff]
    %v174 = vld [vmem:[#allocation3 + $0x220] sm:$0xff]
    %v175 = vld [vmem:[#allocation3 + $0x228] sm:$0xff]
    %v176 = vld [vmem:[#allocation3 + $0x230] sm:$0xff]
    %v177 = vld [vmem:[#allocation3 + $0x238] sm:$0xff]
    %v178 = vld [vmem:[#allocation3 + $0x240] sm:$0xff]
    %v179 = vld [vmem:[#allocation3 + $0x248] sm:$0xff]
    %v180 = vld [vmem:[#allocation3 + $0x250] sm:$0xff]
    %v181 = vld [vmem:[#allocation3 + $0x258] sm:$0xff]
    %v182 = vld [vmem:[#allocation3 + $0x260] sm:$0xff]
    %v183 = vld [vmem:[#allocation3 + $0x268] sm:$0xff]
    %v184 = vld [vmem:[#allocation3 + $0x270] sm:$0xff]
    %v185 = vld [vmem:[#allocation3 + $0x278] sm:$0xff]
    %v186 = vld [vmem:[#allocation3 + $0x280] sm:$0xff]
    %v187 = vld [vmem:[#allocation3 + $0x288] sm:$0xff]
    %v188 = vld [vmem:[#allocation3 + $0x290] sm:$0xff]
    %v189 = vld [vmem:[#allocation3 + $0x298] sm:$0xff]
    %v190 = vld [vmem:[#allocation3 + $0x2a0] sm:$0xff]
    %v191 = vld [vmem:[#allocation3 + $0x2a8] sm:$0xff]
    %v192 = vld [vmem:[#allocation3 + $0x2b0] sm:$0xff]
    %v193 = vld [vmem:[#allocation3 + $0x2b8] sm:$0xff]
    %v194 = vld [vmem:[#allocation3 + $0x2c0] sm:$0xff]
    %v195 = vld [vmem:[#allocation3 + $0x2c8] sm:$0xff]
    %v196 = vld [vmem:[#allocation3 + $0x2d0] sm:$0xff]
    %v197 = vld [vmem:[#allocation3 + $0x2d8] sm:$0xff]
    %v198 = vld [vmem:[#allocation3 + $0x2e0] sm:$0xff]
    %v199 = vld [vmem:[#allocation3 + $0x2e8] sm:$0xff]
    %v200 = vld [vmem:[#allocation3 + $0x2f0] sm:$0xff]
    %v201 = vld [vmem:[#allocation3 + $0x2f8] sm:$0xff]
    %v202 = vld [vmem:[#allocation3 + $0x300] sm:$0xff]
    %v203 = vld [vmem:[#allocation3 + $0x308] sm:$0xff]
    %v204 = vld [vmem:[#allocation3 + $0x310] sm:$0xff]
    %v205 = vld [vmem:[#allocation3 + $0x318] sm:$0xff]
    %v206 = vld [vmem:[#allocation3 + $0x320] sm:$0xff]
    %v207 = vld [vmem:[#allocation3 + $0x328] sm:$0xff]
    %v208 = vld [vmem:[#allocation3 + $0x330] sm:$0xff]
    %v209 = vld [vmem:[#allocation3 + $0x338] sm:$0xff]
    %v210 = vld [vmem:[#allocation3 + $0x340] sm:$0xff]
    %v211 = vld [vmem:[#allocation3 + $0x348] sm:$0xff]
    %v212 = vld [vmem:[#allocation3 + $0x350] sm:$0xff]
    %v213 = vld [vmem:[#allocation3 + $0x358] sm:$0xff]
    %v214 = vld [vmem:[#allocation3 + $0x360] sm:$0xff]
    %v215 = vld [vmem:[#allocation3 + $0x368] sm:$0xff]
    %v216 = vld [vmem:[#allocation3 + $0x370] sm:$0xff]
    %v217 = vld [vmem:[#allocation3 + $0x378] sm:$0xff]
    %v218 = vld [vmem:[#allocation3 + $0x380] sm:$0xff]
    %v219 = vld [vmem:[#allocation3 + $0x388] sm:$0xff]
    %v220 = vld [vmem:[#allocation3 + $0x390] sm:$0xff]
    %v221 = vld [vmem:[#allocation3 + $0x398] sm:$0xff]
    %v222 = vld [vmem:[#allocation3 + $0x3a0] sm:$0xff]
    %v223 = vld [vmem:[#allocation3 + $0x3a8] sm:$0xff]
    %v224 = vld [vmem:[#allocation3 + $0x3b0] sm:$0xff]
    %v225 = vld [vmem:[#allocation3 + $0x3b8] sm:$0xff]
    %v226 = vld [vmem:[#allocation3 + $0x3c0] sm:$0xff]
    %v227 = vld [vmem:[#allocation3 + $0x3c8] sm:$0xff]
    %v228 = vld [vmem:[#allocation3 + $0x3d0] sm:$0xff]
    %v229 = vld [vmem:[#allocation3 + $0x3d8] sm:$0xff]
    %v230 = vld [vmem:[#allocation3 + $0x3e0] sm:$0xff]
    %v231 = vld [vmem:[#allocation3 + $0x3e8] sm:$0xff]
    %v232 = vld [vmem:[#allocation3 + $0x3f0] sm:$0xff]
    %v233 = vld [vmem:[#allocation3 + $0x3f8] sm:$0xff]
    %v234 = vld [vmem:[#allocation3 + $0x400] sm:$0xff]
    %v235 = vld [vmem:[#allocation3 + $0x408] sm:$0xff]
    %v236 = vld [vmem:[#allocation3 + $0x410] sm:$0xff]
    %v237 = vld [vmem:[#allocation3 + $0x418] sm:$0xff]
    %v238 = vld [vmem:[#allocation3 + $0x420] sm:$0xff]
    %v239 = vld [vmem:[#allocation3 + $0x428] sm:$0xff]
    %v240 = vld [vmem:[#allocation3 + $0x430] sm:$0xff]
    %v241 = vld [vmem:[#allocation3 + $0x438] sm:$0xff]
    %v242 = vld [vmem:[#allocation3 + $0x440] sm:$0xff]
    %v243 = vld [vmem:[#allocation3 + $0x448] sm:$0xff]
    %v244 = vld [vmem:[#allocation3 + $0x450] sm:$0xff]
    %v245 = vld [vmem:[#allocation3 + $0x458] sm:$0xff]
    %v246 = vld [vmem:[#allocation3 + $0x460] sm:$0xff]
    %v247 = vld [vmem:[#allocation3 + $0x468] sm:$0xff]
    %v248 = vld [vmem:[#allocation3 + $0x470] sm:$0xff]
    %v249 = vld [vmem:[#allocation3 + $0x478] sm:$0xff]
    %v250 = vld [vmem:[#allocation3 + $0x480] sm:$0xff]
    %v251 = vld [vmem:[#allocation3 + $0x488] sm:$0xff]
    %v252 = vld [vmem:[#allocation3 + $0x490] sm:$0xff]
    %v253 = vld [vmem:[#allocation3 + $0x498] sm:$0xff]
    %v254 = vld [vmem:[#allocation3 + $0x4a0] sm:$0xff]
    %v255 = vld [vmem:[#allocation3 + $0x4a8] sm:$0xff]
    %v256 = vld [vmem:[#allocation3 + $0x4b0] sm:$0xff]
    %v257 = vld [vmem:[#allocation3 + $0x4b8] sm:$0xff]
    %v258 = vld [vmem:[#allocation3 + $0x4c0] sm:$0xff]
    %v259 = vld [vmem:[#allocation3 + $0x4c8] sm:$0xff]
    %v260 = vld [vmem:[#allocation3 + $0x4d0] sm:$0xff]
    %v261 = vld [vmem:[#allocation3 + $0x4d8] sm:$0xff]
    %v262 = vld [vmem:[#allocation3 + $0x4e0] sm:$0xff]
    %v263 = vld [vmem:[#allocation3 + $0x4e8] sm:$0xff]
    %v264 = vld [vmem:[#allocation3 + $0x4f0] sm:$0xff]
    %v265 = vld [vmem:[#allocation3 + $0x4f8] sm:$0xff]
    %v266 = vld [vmem:[#allocation3 + $0x500] sm:$0xff]
    %v267 = vld [vmem:[#allocation3 + $0x508] sm:$0xff]
    %v268 = vld [vmem:[#allocation3 + $0x510] sm:$0xff]
    %v269 = vld [vmem:[#allocation3 + $0x518] sm:$0xff]
    %v270 = vld [vmem:[#allocation3 + $0x520] sm:$0xff]
    %v271 = vld [vmem:[#allocation3 + $0x528] sm:$0xff]
    %v272 = vld [vmem:[#allocation3 + $0x530] sm:$0xff]
    %v273 = vld [vmem:[#allocation3 + $0x538] sm:$0xff]
    %v274 = vld [vmem:[#allocation3 + $0x540] sm:$0xff]
    %v275 = vld [vmem:[#allocation3 + $0x548] sm:$0xff]
    %v276 = vld [vmem:[#allocation3 + $0x550] sm:$0xff]
    %v277 = vld [vmem:[#allocation3 + $0x558] sm:$0xff]
    %v278 = vld [vmem:[#allocation3 + $0x560] sm:$0xff]
    %v279 = vld [vmem:[#allocation3 + $0x568] sm:$0xff]
    %v280 = vld [vmem:[#allocation3 + $0x570] sm:$0xff]
    %v281 = vld [vmem:[#allocation3 + $0x578] sm:$0xff]
    %v282 = vld [vmem:[#allocation3 + $0x580] sm:$0xff]
    %v283 = vld [vmem:[#allocation3 + $0x588] sm:$0xff]
    %v284 = vld [vmem:[#allocation3 + $0x590] sm:$0xff]
    %v285 = vld [vmem:[#allocation3 + $0x598] sm:$0xff]
    %v286 = vld [vmem:[#allocation3 + $0x5a0] sm:$0xff]
    %v287 = vld [vmem:[#allocation3 + $0x5a8] sm:$0xff]
    %v288 = vld [vmem:[#allocation3 + $0x5b0] sm:$0xff]
    %v289 = vld [vmem:[#allocation3 + $0x5b8] sm:$0xff]
    %v290 = vld [vmem:[#allocation3 + $0x5c0] sm:$0xff]
    %v291 = vld [vmem:[#allocation3 + $0x5c8] sm:$0xff]
    %v292 = vld [vmem:[#allocation3 + $0x5d0] sm:$0xff]
    %v293 = vld [vmem:[#allocation3 + $0x5d8] sm:$0xff]
    %v294 = vld [vmem:[#allocation3 + $0x5e0] sm:$0xff]
    %v295 = vld [vmem:[#allocation3 + $0x5e8] sm:$0xff]
    %v296 = vld [vmem:[#allocation3 + $0x5f0] sm:$0xff]
    %v297 = vld [vmem:[#allocation3 + $0x5f8] sm:$0xff]
    %v298 = vld [vmem:[#allocation3 + $0x600] sm:$0xff]
    %v299 = vld [vmem:[#allocation3 + $0x608] sm:$0xff]
    %v300 = vld [vmem:[#allocation3 + $0x610] sm:$0xff]
    %v301 = vld [vmem:[#allocation3 + $0x618] sm:$0xff]
    %v302 = vld [vmem:[%s2] sm:$0xf]
    %v304 = vperm.slane %v302, 0
    %v305 = vperm.slane %v302, 1
    %v306 = vperm.slane %v302, 2
    %v307 = vperm.slane %v302, 3
    %v508 = vunpack.c.l.b16 %v106
    %v509 = vunpack.c.h.b16 %v106
    %v510 = vunpack.c.l.b16 %v107
    %v511 = vunpack.c.h.b16 %v107
    %v512 = vunpack.c.l.b16 %v108
    %v513 = vunpack.c.h.b16 %v108
    %v514 = vunpack.c.l.b16 %v109
    %v515 = vunpack.c.h.b16 %v109
    %v516 = vunpack.c.l.b16 %v110
    %v517 = vunpack.c.h.b16 %v110
    %v518 = vunpack.c.l.b16 %v111
    %v519 = vunpack.c.h.b16 %v111
    %v520 = vunpack.c.l.b16 %v112
    %v521 = vunpack.c.h.b16 %v112
    %v522 = vunpack.c.l.b16 %v113
    %v523 = vunpack.c.h.b16 %v113
    %v524 = vunpack.c.l.b16 %v114
    %v525 = vunpack.c.h.b16 %v114
    %v526 = vunpack.c.l.b16 %v115
    %v527 = vunpack.c.h.b16 %v115
    %v528 = vunpack.c.l.b16 %v116
    %v529 = vunpack.c.h.b16 %v116
    %v530 = vunpack.c.l.b16 %v117
    %v531 = vunpack.c.h.b16 %v117
    %v532 = vunpack.c.l.b16 %v118
    %v533 = vunpack.c.h.b16 %v118
    %v534 = vunpack.c.l.b16 %v119
    %v535 = vunpack.c.h.b16 %v119
    %v536 = vunpack.c.l.b16 %v120
    %v537 = vunpack.c.h.b16 %v120
    %v538 = vunpack.c.l.b16 %v121
    %v539 = vunpack.c.h.b16 %v121
    %v540 = vunpack.c.l.b16 %v122
    %v541 = vunpack.c.h.b16 %v122
    %v542 = vunpack.c.l.b16 %v123
    %v543 = vunpack.c.h.b16 %v123
    %v544 = vunpack.c.l.b16 %v124
    %v545 = vunpack.c.h.b16 %v124
    %v546 = vunpack.c.l.b16 %v125
    %v547 = vunpack.c.h.b16 %v125
    %v548 = vunpack.c.l.b16 %v126
    %v549 = vunpack.c.h.b16 %v126
    %v550 = vunpack.c.l.b16 %v127
    %v551 = vunpack.c.h.b16 %v127
    %v552 = vunpack.c.l.b16 %v128
    %v553 = vunpack.c.h.b16 %v128
    %v554 = vunpack.c.l.b16 %v129
    %v555 = vunpack.c.h.b16 %v129
    %v556 = vunpack.c.l.b16 %v130
    %v557 = vunpack.c.h.b16 %v130
    %v558 = vunpack.c.l.b16 %v131
    %v559 = vunpack.c.h.b16 %v131
    %v560 = vunpack.c.l.b16 %v132
    %v561 = vunpack.c.h.b16 %v132
    %v562 = vunpack.c.l.b16 %v133
    %v563 = vunpack.c.h.b16 %v133
    %v564 = vunpack.c.l.b16 %v134
    %v565 = vunpack.c.h.b16 %v134
    %v566 = vunpack.c.l.b16 %v135
    %v567 = vunpack.c.h.b16 %v135
    %v568 = vunpack.c.l.b16 %v136
    %v569 = vunpack.c.h.b16 %v136
    %v570 = vunpack.c.l.b16 %v137
    %v571 = vunpack.c.h.b16 %v137
    %v572 = vunpack.c.l.b16 %v138
    %v573 = vunpack.c.h.b16 %v138
    %v574 = vunpack.c.l.b16 %v139
    %v575 = vunpack.c.h.b16 %v139
    %v576 = vunpack.c.l.b16 %v140
    %v577 = vunpack.c.h.b16 %v140
    %v578 = vunpack.c.l.b16 %v141
    %v579 = vunpack.c.h.b16 %v141
    %v580 = vunpack.c.l.b16 %v142
    %v581 = vunpack.c.h.b16 %v142
    %v582 = vunpack.c.l.b16 %v143
    %v583 = vunpack.c.h.b16 %v143
    %v584 = vunpack.c.l.b16 %v144
    %v585 = vunpack.c.h.b16 %v144
    %v586 = vunpack.c.l.b16 %v145
    %v587 = vunpack.c.h.b16 %v145
    %v588 = vunpack.c.l.b16 %v146
    %v589 = vunpack.c.h.b16 %v146
    %v590 = vunpack.c.l.b16 %v147
    %v591 = vunpack.c.h.b16 %v147
    %v592 = vunpack.c.l.b16 %v148
    %v593 = vunpack.c.h.b16 %v148
    %v594 = vunpack.c.l.b16 %v149
    %v595 = vunpack.c.h.b16 %v149
    %v596 = vunpack.c.l.b16 %v150
    %v597 = vunpack.c.h.b16 %v150
    %v598 = vunpack.c.l.b16 %v151
    %v599 = vunpack.c.h.b16 %v151
    %v600 = vunpack.c.l.b16 %v152
    %v601 = vunpack.c.h.b16 %v152
    %v602 = vunpack.c.l.b16 %v153
    %v603 = vunpack.c.h.b16 %v153
    %v604 = vunpack.c.l.b16 %v154
    %v605 = vunpack.c.h.b16 %v154
    %v606 = vunpack.c.l.b16 %v155
    %v607 = vunpack.c.h.b16 %v155
    %v608 = vunpack.c.l.b16 %v156
    %v609 = vunpack.c.h.b16 %v156
    %v610 = vunpack.c.l.b16 %v157
    %v611 = vunpack.c.h.b16 %v157
    %v612 = vunpack.c.l.b16 %v158
    %v613 = vunpack.c.h.b16 %v158
    %v614 = vunpack.c.l.b16 %v159
    %v615 = vunpack.c.h.b16 %v159
    %v616 = vunpack.c.l.b16 %v160
    %v617 = vunpack.c.h.b16 %v160
    %v618 = vunpack.c.l.b16 %v161
    %v619 = vunpack.c.h.b16 %v161
    %v620 = vunpack.c.l.b16 %v162
    %v621 = vunpack.c.h.b16 %v162
    %v622 = vunpack.c.l.b16 %v163
    %v623 = vunpack.c.h.b16 %v163
    %v624 = vunpack.c.l.b16 %v164
    %v625 = vunpack.c.h.b16 %v164
    %v626 = vunpack.c.l.b16 %v165
    %v627 = vunpack.c.h.b16 %v165
    %v628 = vunpack.c.l.b16 %v166
    %v629 = vunpack.c.h.b16 %v166
    %v630 = vunpack.c.l.b16 %v167
    %v631 = vunpack.c.h.b16 %v167
    %v632 = vunpack.c.l.b16 %v168
    %v633 = vunpack.c.h.b16 %v168
    %v634 = vunpack.c.l.b16 %v169
    %v635 = vunpack.c.h.b16 %v169
    %v636 = vunpack.c.l.b16 %v170
    %v637 = vunpack.c.h.b16 %v170
    %v638 = vunpack.c.l.b16 %v171
    %v639 = vunpack.c.h.b16 %v171
    %v640 = vunpack.c.l.b16 %v172
    %v641 = vunpack.c.h.b16 %v172
    %v642 = vunpack.c.l.b16 %v173
    %v643 = vunpack.c.h.b16 %v173
    %v644 = vunpack.c.l.b16 %v174
    %v645 = vunpack.c.h.b16 %v174
    %v646 = vunpack.c.l.b16 %v175
    %v647 = vunpack.c.h.b16 %v175
    %v648 = vunpack.c.l.b16 %v176
    %v649 = vunpack.c.h.b16 %v176
    %v650 = vunpack.c.l.b16 %v177
    %v651 = vunpack.c.h.b16 %v177
    %v652 = vunpack.c.l.b16 %v178
    %v653 = vunpack.c.h.b16 %v178
    %v654 = vunpack.c.l.b16 %v179
    %v655 = vunpack.c.h.b16 %v179
    %v656 = vunpack.c.l.b16 %v180
    %v657 = vunpack.c.h.b16 %v180
    %v658 = vunpack.c.l.b16 %v181
    %v659 = vunpack.c.h.b16 %v181
    %v660 = vunpack.c.l.b16 %v182
    %v661 = vunpack.c.h.b16 %v182
    %v662 = vunpack.c.l.b16 %v183
    %v663 = vunpack.c.h.b16 %v183
    %v664 = vunpack.c.l.b16 %v184
    %v665 = vunpack.c.h.b16 %v184
    %v666 = vunpack.c.l.b16 %v185
    %v667 = vunpack.c.h.b16 %v185
    %v668 = vunpack.c.l.b16 %v186
    %v669 = vunpack.c.h.b16 %v186
    %v670 = vunpack.c.l.b16 %v187
    %v671 = vunpack.c.h.b16 %v187
    %v672 = vunpack.c.l.b16 %v188
    %v673 = vunpack.c.h.b16 %v188
    %v674 = vunpack.c.l.b16 %v189
    %v675 = vunpack.c.h.b16 %v189
    %v676 = vunpack.c.l.b16 %v190
    %v677 = vunpack.c.h.b16 %v190
    %v678 = vunpack.c.l.b16 %v191
    %v679 = vunpack.c.h.b16 %v191
    %v680 = vunpack.c.l.b16 %v192
    %v681 = vunpack.c.h.b16 %v192
    %v682 = vunpack.c.l.b16 %v193
    %v683 = vunpack.c.h.b16 %v193
    %v684 = vunpack.c.l.b16 %v194
    %v685 = vunpack.c.h.b16 %v194
    %v686 = vunpack.c.l.b16 %v195
    %v687 = vunpack.c.h.b16 %v195
    %v688 = vunpack.c.l.b16 %v196
    %v689 = vunpack.c.h.b16 %v196
    %v690 = vunpack.c.l.b16 %v197
    %v691 = vunpack.c.h.b16 %v197
    %v692 = vunpack.c.l.b16 %v198
    %v693 = vunpack.c.h.b16 %v198
    %v694 = vunpack.c.l.b16 %v199
    %v695 = vunpack.c.h.b16 %v199
    %v696 = vunpack.c.l.b16 %v200
    %v697 = vunpack.c.h.b16 %v200
    %v698 = vunpack.c.l.b16 %v201
    %v699 = vunpack.c.h.b16 %v201
    %v700 = vunpack.c.l.b16 %v202
    %v701 = vunpack.c.h.b16 %v202
    %v702 = vunpack.c.l.b16 %v203
    %v703 = vunpack.c.h.b16 %v203
    %v704 = vunpack.c.l.b16 %v204
    %v705 = vunpack.c.h.b16 %v204
    %v706 = vunpack.c.l.b16 %v205
    %v707 = vunpack.c.h.b16 %v205
    %v708 = vunpack.c.l.b16 %v206
    %v709 = vunpack.c.h.b16 %v206
    %v710 = vunpack.c.l.b16 %v207
    %v711 = vunpack.c.h.b16 %v207
    %v712 = vunpack.c.l.b16 %v208
    %v713 = vunpack.c.h.b16 %v208
    %v714 = vunpack.c.l.b16 %v209
    %v715 = vunpack.c.h.b16 %v209
    %v716 = vunpack.c.l.b16 %v210
    %v717 = vunpack.c.h.b16 %v210
    %v718 = vunpack.c.l.b16 %v211
    %v719 = vunpack.c.h.b16 %v211
    %v720 = vunpack.c.l.b16 %v212
    %v721 = vunpack.c.h.b16 %v212
    %v722 = vunpack.c.l.b16 %v213
    %v723 = vunpack.c.h.b16 %v213
    %v724 = vunpack.c.l.b16 %v214
    %v725 = vunpack.c.h.b16 %v214
    %v726 = vunpack.c.l.b16 %v215
    %v727 = vunpack.c.h.b16 %v215
    %v728 = vunpack.c.l.b16 %v216
    %v729 = vunpack.c.h.b16 %v216
    %v730 = vunpack.c.l.b16 %v217
    %v731 = vunpack.c.h.b16 %v217
    %v732 = vunpack.c.l.b16 %v218
    %v733 = vunpack.c.h.b16 %v218
    %v734 = vunpack.c.l.b16 %v219
    %v735 = vunpack.c.h.b16 %v219
    %v736 = vunpack.c.l.b16 %v220
    %v737 = vunpack.c.h.b16 %v220
    %v738 = vunpack.c.l.b16 %v221
    %v739 = vunpack.c.h.b16 %v221
    %v740 = vunpack.c.l.b16 %v222
    %v741 = vunpack.c.h.b16 %v222
    %v742 = vunpack.c.l.b16 %v223
    %v743 = vunpack.c.h.b16 %v223
    %v744 = vunpack.c.l.b16 %v224
    %v745 = vunpack.c.h.b16 %v224
    %v746 = vunpack.c.l.b16 %v225
    %v747 = vunpack.c.h.b16 %v225
    %v748 = vunpack.c.l.b16 %v226
    %v749 = vunpack.c.h.b16 %v226
    %v750 = vunpack.c.l.b16 %v227
    %v751 = vunpack.c.h.b16 %v227
    %v752 = vunpack.c.l.b16 %v228
    %v753 = vunpack.c.h.b16 %v228
    %v754 = vunpack.c.l.b16 %v229
    %v755 = vunpack.c.h.b16 %v229
    %v756 = vunpack.c.l.b16 %v230
    %v757 = vunpack.c.h.b16 %v230
    %v758 = vunpack.c.l.b16 %v231
    %v759 = vunpack.c.h.b16 %v231
    %v760 = vunpack.c.l.b16 %v232
    %v761 = vunpack.c.h.b16 %v232
    %v762 = vunpack.c.l.b16 %v233
    %v763 = vunpack.c.h.b16 %v233
    %v764 = vunpack.c.l.b16 %v234
    %v765 = vunpack.c.h.b16 %v234
    %v766 = vunpack.c.l.b16 %v235
    %v767 = vunpack.c.h.b16 %v235
    %v768 = vunpack.c.l.b16 %v236
    %v769 = vunpack.c.h.b16 %v236
    %v770 = vunpack.c.l.b16 %v237
    %v771 = vunpack.c.h.b16 %v237
    %v772 = vunpack.c.l.b16 %v238
    %v773 = vunpack.c.h.b16 %v238
    %v774 = vunpack.c.l.b16 %v239
    %v775 = vunpack.c.h.b16 %v239
    %v776 = vunpack.c.l.b16 %v240
    %v777 = vunpack.c.h.b16 %v240
    %v778 = vunpack.c.l.b16 %v241
    %v779 = vunpack.c.h.b16 %v241
    %v780 = vunpack.c.l.b16 %v242
    %v781 = vunpack.c.h.b16 %v242
    %v782 = vunpack.c.l.b16 %v243
    %v783 = vunpack.c.h.b16 %v243
    %v784 = vunpack.c.l.b16 %v244
    %v785 = vunpack.c.h.b16 %v244
    %v786 = vunpack.c.l.b16 %v245
    %v787 = vunpack.c.h.b16 %v245
    %v788 = vunpack.c.l.b16 %v246
    %v789 = vunpack.c.h.b16 %v246
    %v790 = vunpack.c.l.b16 %v247
    %v791 = vunpack.c.h.b16 %v247
    %v792 = vunpack.c.l.b16 %v248
    %v793 = vunpack.c.h.b16 %v248
    %v794 = vunpack.c.l.b16 %v249
    %v795 = vunpack.c.h.b16 %v249
    %v796 = vunpack.c.l.b16 %v250
    %v797 = vunpack.c.h.b16 %v250
    %v798 = vunpack.c.l.b16 %v251
    %v799 = vunpack.c.h.b16 %v251
    %v800 = vunpack.c.l.b16 %v252
    %v801 = vunpack.c.h.b16 %v252
    %v802 = vunpack.c.l.b16 %v253
    %v803 = vunpack.c.h.b16 %v253
    %v804 = vunpack.c.l.b16 %v254
    %v805 = vunpack.c.h.b16 %v254
    %v806 = vunpack.c.l.b16 %v255
    %v807 = vunpack.c.h.b16 %v255
    %v808 = vunpack.c.l.b16 %v256
    %v809 = vunpack.c.h.b16 %v256
    %v810 = vunpack.c.l.b16 %v257
    %v811 = vunpack.c.h.b16 %v257
    %v812 = vunpack.c.l.b16 %v258
    %v813 = vunpack.c.h.b16 %v258
    %v814 = vunpack.c.l.b16 %v259
    %v815 = vunpack.c.h.b16 %v259
    %v816 = vunpack.c.l.b16 %v260
    %v817 = vunpack.c.h.b16 %v260
    %v818 = vunpack.c.l.b16 %v261
    %v819 = vunpack.c.h.b16 %v261
    %v820 = vunpack.c.l.b16 %v262
    %v821 = vunpack.c.h.b16 %v262
    %v822 = vunpack.c.l.b16 %v263
    %v823 = vunpack.c.h.b16 %v263
    %v824 = vunpack.c.l.b16 %v264
    %v825 = vunpack.c.h.b16 %v264
    %v826 = vunpack.c.l.b16 %v265
    %v827 = vunpack.c.h.b16 %v265
    %v828 = vunpack.c.l.b16 %v266
    %v829 = vunpack.c.h.b16 %v266
    %v830 = vunpack.c.l.b16 %v267
    %v831 = vunpack.c.h.b16 %v267
    %v832 = vunpack.c.l.b16 %v268
    %v833 = vunpack.c.h.b16 %v268
    %v834 = vunpack.c.l.b16 %v269
    %v835 = vunpack.c.h.b16 %v269
    %v836 = vunpack.c.l.b16 %v270
    %v837 = vunpack.c.h.b16 %v270
    %v838 = vunpack.c.l.b16 %v271
    %v839 = vunpack.c.h.b16 %v271
    %v840 = vunpack.c.l.b16 %v272
    %v841 = vunpack.c.h.b16 %v272
    %v842 = vunpack.c.l.b16 %v273
    %v843 = vunpack.c.h.b16 %v273
    %v844 = vunpack.c.l.b16 %v274
    %v845 = vunpack.c.h.b16 %v274
    %v846 = vunpack.c.l.b16 %v275
    %v847 = vunpack.c.h.b16 %v275
    %v848 = vunpack.c.l.b16 %v276
    %v849 = vunpack.c.h.b16 %v276
    %v850 = vunpack.c.l.b16 %v277
    %v851 = vunpack.c.h.b16 %v277
    %v852 = vunpack.c.l.b16 %v278
    %v853 = vunpack.c.h.b16 %v278
    %v854 = vunpack.c.l.b16 %v279
    %v855 = vunpack.c.h.b16 %v279
    %v856 = vunpack.c.l.b16 %v280
    %v857 = vunpack.c.h.b16 %v280
    %v858 = vunpack.c.l.b16 %v281
    %v859 = vunpack.c.h.b16 %v281
    %v860 = vunpack.c.l.b16 %v282
    %v861 = vunpack.c.h.b16 %v282
    %v862 = vunpack.c.l.b16 %v283
    %v863 = vunpack.c.h.b16 %v283
    %v864 = vunpack.c.l.b16 %v284
    %v865 = vunpack.c.h.b16 %v284
    %v866 = vunpack.c.l.b16 %v285
    %v867 = vunpack.c.h.b16 %v285
    %v868 = vunpack.c.l.b16 %v286
    %v869 = vunpack.c.h.b16 %v286
    %v870 = vunpack.c.l.b16 %v287
    %v871 = vunpack.c.h.b16 %v287
    %v872 = vunpack.c.l.b16 %v288
    %v873 = vunpack.c.h.b16 %v288
    %v874 = vunpack.c.l.b16 %v289
    %v875 = vunpack.c.h.b16 %v289
    %v876 = vunpack.c.l.b16 %v290
    %v877 = vunpack.c.h.b16 %v290
    %v878 = vunpack.c.l.b16 %v291
    %v879 = vunpack.c.h.b16 %v291
    %v880 = vunpack.c.l.b16 %v292
    %v881 = vunpack.c.h.b16 %v292
    %v882 = vunpack.c.l.b16 %v293
    %v883 = vunpack.c.h.b16 %v293
    %v884 = vunpack.c.l.b16 %v294
    %v885 = vunpack.c.h.b16 %v294
    %v886 = vunpack.c.l.b16 %v295
    %v887 = vunpack.c.h.b16 %v295
    %v888 = vunpack.c.l.b16 %v296
    %v889 = vunpack.c.h.b16 %v296
    %v890 = vunpack.c.l.b16 %v297
    %v891 = vunpack.c.h.b16 %v297
    %v892 = vunpack.c.l.b16 %v298
    %v893 = vunpack.c.h.b16 %v298
    %v894 = vunpack.c.l.b16 %v299
    %v895 = vunpack.c.h.b16 %v299
    %v896 = vunpack.c.l.b16 %v300
    %v897 = vunpack.c.h.b16 %v300
    %v898 = vunpack.c.l.b16 %v301
    %v899 = vunpack.c.h.b16 %v301
    %v900 = vpack.c.b16 %v512, %v508
    %v901 = vpack.c.b16 %v513, %v509
    %v902 = vpack.c.b16 %v514, %v510
    %v903 = vpack.c.b16 %v515, %v511
    %v904 = vpack.c.b16 %v520, %v516
    %v905 = vpack.c.b16 %v521, %v517
    %v906 = vpack.c.b16 %v522, %v518
    %v907 = vpack.c.b16 %v523, %v519
    %v908 = vpack.c.b16 %v528, %v524
    %v909 = vpack.c.b16 %v529, %v525
    %v910 = vpack.c.b16 %v530, %v526
    %v911 = vpack.c.b16 %v531, %v527
    %v912 = vpack.c.b16 %v536, %v532
    %v913 = vpack.c.b16 %v537, %v533
    %v914 = vpack.c.b16 %v538, %v534
    %v915 = vpack.c.b16 %v539, %v535
    %v916 = vpack.c.b16 %v544, %v540
    %v917 = vpack.c.b16 %v545, %v541
    %v918 = vpack.c.b16 %v546, %v542
    %v919 = vpack.c.b16 %v547, %v543
    %v920 = vpack.c.b16 %v552, %v548
    %v921 = vpack.c.b16 %v553, %v549
    %v922 = vpack.c.b16 %v554, %v550
    %v923 = vpack.c.b16 %v555, %v551
    %v924 = vpack.c.b16 %v560, %v556
    %v925 = vpack.c.b16 %v561, %v557
    %v926 = vpack.c.b16 %v562, %v558
    %v927 = vpack.c.b16 %v563, %v559
    %v928 = vpack.c.b16 %v568, %v564
    %v929 = vpack.c.b16 %v569, %v565
    %v930 = vpack.c.b16 %v570, %v566
    %v931 = vpack.c.b16 %v571, %v567
    %v932 = vpack.c.b16 %v576, %v572
    %v933 = vpack.c.b16 %v577, %v573
    %v934 = vpack.c.b16 %v578, %v574
    %v935 = vpack.c.b16 %v579, %v575
    %v936 = vpack.c.b16 %v584, %v580
    %v937 = vpack.c.b16 %v585, %v581
    %v938 = vpack.c.b16 %v586, %v582
    %v939 = vpack.c.b16 %v587, %v583
    %v940 = vpack.c.b16 %v592, %v588
    %v941 = vpack.c.b16 %v593, %v589
    %v942 = vpack.c.b16 %v594, %v590
    %v943 = vpack.c.b16 %v595, %v591
    %v944 = vpack.c.b16 %v600, %v596
    %v945 = vpack.c.b16 %v601, %v597
    %v946 = vpack.c.b16 %v602, %v598
    %v947 = vpack.c.b16 %v603, %v599
    %v948 = vpack.c.b16 %v608, %v604
    %v949 = vpack.c.b16 %v609, %v605
    %v950 = vpack.c.b16 %v610, %v606
    %v951 = vpack.c.b16 %v611, %v607
    %v952 = vpack.c.b16 %v616, %v612
    %v953 = vpack.c.b16 %v617, %v613
    %v954 = vpack.c.b16 %v618, %v614
    %v955 = vpack.c.b16 %v619, %v615
    %v956 = vpack.c.b16 %v624, %v620
    %v957 = vpack.c.b16 %v625, %v621
    %v958 = vpack.c.b16 %v626, %v622
    %v959 = vpack.c.b16 %v627, %v623
    %v960 = vpack.c.b16 %v632, %v628
    %v961 = vpack.c.b16 %v633, %v629
    %v962 = vpack.c.b16 %v634, %v630
    %v963 = vpack.c.b16 %v635, %v631
    %v964 = vpack.c.b16 %v640, %v636
    %v965 = vpack.c.b16 %v641, %v637
    %v966 = vpack.c.b16 %v642, %v638
    %v967 = vpack.c.b16 %v643, %v639
    %v968 = vpack.c.b16 %v648, %v644
    %v969 = vpack.c.b16 %v649, %v645
    %v970 = vpack.c.b16 %v650, %v646
    %v971 = vpack.c.b16 %v651, %v647
    %v972 = vpack.c.b16 %v656, %v652
    %v973 = vpack.c.b16 %v657, %v653
    %v974 = vpack.c.b16 %v658, %v654
    %v975 = vpack.c.b16 %v659, %v655
    %v976 = vpack.c.b16 %v664, %v660
    %v977 = vpack.c.b16 %v665, %v661
    %v978 = vpack.c.b16 %v666, %v662
    %v979 = vpack.c.b16 %v667, %v663
    %v980 = vpack.c.b16 %v672, %v668
    %v981 = vpack.c.b16 %v673, %v669
    %v982 = vpack.c.b16 %v674, %v670
    %v983 = vpack.c.b16 %v675, %v671
    %v984 = vpack.c.b16 %v680, %v676
    %v985 = vpack.c.b16 %v681, %v677
    %v986 = vpack.c.b16 %v682, %v678
    %v987 = vpack.c.b16 %v683, %v679
    %v988 = vpack.c.b16 %v688, %v684
    %v989 = vpack.c.b16 %v689, %v685
    %v990 = vpack.c.b16 %v690, %v686
    %v991 = vpack.c.b16 %v691, %v687
    %v992 = vpack.c.b16 %v696, %v692
    %v993 = vpack.c.b16 %v697, %v693
    %v994 = vpack.c.b16 %v698, %v694
    %v995 = vpack.c.b16 %v699, %v695
    %v996 = vpack.c.b16 %v704, %v700
    %v997 = vpack.c.b16 %v705, %v701
    %v998 = vpack.c.b16 %v706, %v702
    %v999 = vpack.c.b16 %v707, %v703
    %v1000 = vpack.c.b16 %v712, %v708
    %v1001 = vpack.c.b16 %v713, %v709
    %v1002 = vpack.c.b16 %v714, %v710
    %v1003 = vpack.c.b16 %v715, %v711
    %v1004 = vpack.c.b16 %v720, %v716
    %v1005 = vpack.c.b16 %v721, %v717
    %v1006 = vpack.c.b16 %v722, %v718
    %v1007 = vpack.c.b16 %v723, %v719
    %v1008 = vpack.c.b16 %v728, %v724
    %v1009 = vpack.c.b16 %v729, %v725
    %v1010 = vpack.c.b16 %v730, %v726
    %v1011 = vpack.c.b16 %v731, %v727
    %v1012 = vpack.c.b16 %v736, %v732
    %v1013 = vpack.c.b16 %v737, %v733
    %v1014 = vpack.c.b16 %v738, %v734
    %v1015 = vpack.c.b16 %v739, %v735
    %v1016 = vpack.c.b16 %v744, %v740
    %v1017 = vpack.c.b16 %v745, %v741
    %v1018 = vpack.c.b16 %v746, %v742
    %v1019 = vpack.c.b16 %v747, %v743
    %v1020 = vpack.c.b16 %v752, %v748
    %v1021 = vpack.c.b16 %v753, %v749
    %v1022 = vpack.c.b16 %v754, %v750
    %v1023 = vpack.c.b16 %v755, %v751
    %v1024 = vpack.c.b16 %v760, %v756
    %v1025 = vpack.c.b16 %v761, %v757
    %v1026 = vpack.c.b16 %v762, %v758
    %v1027 = vpack.c.b16 %v763, %v759
    %v1028 = vpack.c.b16 %v768, %v764
    %v1029 = vpack.c.b16 %v769, %v765
    %v1030 = vpack.c.b16 %v770, %v766
    %v1031 = vpack.c.b16 %v771, %v767
    %v1032 = vpack.c.b16 %v776, %v772
    %v1033 = vpack.c.b16 %v777, %v773
    %v1034 = vpack.c.b16 %v778, %v774
    %v1035 = vpack.c.b16 %v779, %v775
    %v1036 = vpack.c.b16 %v784, %v780
    %v1037 = vpack.c.b16 %v785, %v781
    %v1038 = vpack.c.b16 %v786, %v782
    %v1039 = vpack.c.b16 %v787, %v783
    %v1040 = vpack.c.b16 %v792, %v788
    %v1041 = vpack.c.b16 %v793, %v789
    %v1042 = vpack.c.b16 %v794, %v790
    %v1043 = vpack.c.b16 %v795, %v791
    %v1044 = vpack.c.b16 %v800, %v796
    %v1045 = vpack.c.b16 %v801, %v797
    %v1046 = vpack.c.b16 %v802, %v798
    %v1047 = vpack.c.b16 %v803, %v799
    %v1048 = vpack.c.b16 %v808, %v804
    %v1049 = vpack.c.b16 %v809, %v805
    %v1050 = vpack.c.b16 %v810, %v806
    %v1051 = vpack.c.b16 %v811, %v807
    %v1052 = vpack.c.b16 %v816, %v812
    %v1053 = vpack.c.b16 %v817, %v813
    %v1054 = vpack.c.b16 %v818, %v814
    %v1055 = vpack.c.b16 %v819, %v815
    %v1056 = vpack.c.b16 %v824, %v820
    %v1057 = vpack.c.b16 %v825, %v821
    %v1058 = vpack.c.b16 %v826, %v822
    %v1059 = vpack.c.b16 %v827, %v823
    %v1060 = vpack.c.b16 %v832, %v828
    %v1061 = vpack.c.b16 %v833, %v829
    %v1062 = vpack.c.b16 %v834, %v830
    %v1063 = vpack.c.b16 %v835, %v831
    %v1064 = vpack.c.b16 %v840, %v836
    %v1065 = vpack.c.b16 %v841, %v837
    %v1066 = vpack.c.b16 %v842, %v838
    %v1067 = vpack.c.b16 %v843, %v839
    %v1068 = vpack.c.b16 %v848, %v844
    %v1069 = vpack.c.b16 %v849, %v845
    %v1070 = vpack.c.b16 %v850, %v846
    %v1071 = vpack.c.b16 %v851, %v847
    %v1072 = vpack.c.b16 %v856, %v852
    %v1073 = vpack.c.b16 %v857, %v853
    %v1074 = vpack.c.b16 %v858, %v854
    %v1075 = vpack.c.b16 %v859, %v855
    %v1076 = vpack.c.b16 %v864, %v860
    %v1077 = vpack.c.b16 %v865, %v861
    %v1078 = vpack.c.b16 %v866, %v862
    %v1079 = vpack.c.b16 %v867, %v863
    %v1080 = vpack.c.b16 %v872, %v868
    %v1081 = vpack.c.b16 %v873, %v869
    %v1082 = vpack.c.b16 %v874, %v870
    %v1083 = vpack.c.b16 %v875, %v871
    %v1084 = vpack.c.b16 %v880, %v876
    %v1085 = vpack.c.b16 %v881, %v877
    %v1086 = vpack.c.b16 %v882, %v878
    %v1087 = vpack.c.b16 %v883, %v879
    %v1088 = vpack.c.b16 %v888, %v884
    %v1089 = vpack.c.b16 %v889, %v885
    %v1090 = vpack.c.b16 %v890, %v886
    %v1091 = vpack.c.b16 %v891, %v887
    %v1092 = vpack.c.b16 %v896, %v892
    %v1093 = vpack.c.b16 %v897, %v893
    %v1094 = vpack.c.b16 %v898, %v894
    %v1095 = vpack.c.b16 %v899, %v895
    %vm1292 = vcmask 130048
    %v1294 = vsel %vm1292, %v105, 0
    %1296 = vmatpush.bf16.msra.mxu0 %v928
    %1297 = vmatpush.bf16.msra.mxu0 %v924
    %1298 = vmatpush.bf16.msra.mxu0 %v920
    %1299 = vmatpush.bf16.msra.mxu0 %v916
    %1300 = vmatpush.bf16.msra.mxu0 %v912
    %1301 = vmatpush.bf16.msra.mxu0 %v908
    %1302 = vmatpush.bf16.msra.mxu0 %v904
    %1303 = vmatpush.bf16.msra.mxu0 %v900
    %1304 = vmatmul.bf16.gmra.mxu0 %v99
    %v1305 = vpop.f32.mrf.mxu0
    %v1306 = vadd.f32 %v304, %v1305
    %v1307 = vpop.f32.mrf.mxu0
    %v1308 = vadd.f32 %v304, %v1307
    %1309 = vdwg.mxu0
    %1310 = vmatpush.bf16.msra.mxu0 %v960
    %1311 = vmatpush.bf16.msra.mxu0 %v956
    %1312 = vmatpush.bf16.msra.mxu0 %v952
    %1313 = vmatpush.bf16.msra.mxu0 %v948
    %1314 = vmatpush.bf16.msra.mxu0 %v944
    %1315 = vmatpush.bf16.msra.mxu0 %v940
    %1316 = vmatpush.bf16.msra.mxu0 %v936
    %1317 = vmatpush.bf16.msra.mxu0 %v932
    %1318 = vmatmul.bf16.gmra.mxu0 %v100
    %v1319 = vpop.f32.mrf.mxu0
    %v1320 = vadd.f32 %v1306, %v1319
    %v1321 = vpop.f32.mrf.mxu0
    %v1322 = vadd.f32 %v1308, %v1321
    %1323 = vdwg.mxu0
    %1324 = vmatpush.bf16.msra.mxu0 %v992
    %1325 = vmatpush.bf16.msra.mxu0 %v988
    %1326 = vmatpush.bf16.msra.mxu0 %v984
    %1327 = vmatpush.bf16.msra.mxu0 %v980
    %1328 = vmatpush.bf16.msra.mxu0 %v976
    %1329 = vmatpush.bf16.msra.mxu0 %v972
    %1330 = vmatpush.bf16.msra.mxu0 %v968
    %1331 = vmatpush.bf16.msra.mxu0 %v964
    %1332 = vmatmul.bf16.gmra.mxu0 %v101
    %v1333 = vpop.f32.mrf.mxu0
    %v1334 = vadd.f32 %v1320, %v1333
    %v1335 = vpop.f32.mrf.mxu0
    %v1336 = vadd.f32 %v1322, %v1335
    %1337 = vdwg.mxu0
    %1338 = vmatpush.bf16.msra.mxu0 %v1024
    %1339 = vmatpush.bf16.msra.mxu0 %v1020
    %1340 = vmatpush.bf16.msra.mxu0 %v1016
    %1341 = vmatpush.bf16.msra.mxu0 %v1012
    %1342 = vmatpush.bf16.msra.mxu0 %v1008
    %1343 = vmatpush.bf16.msra.mxu0 %v1004
    %1344 = vmatpush.bf16.msra.mxu0 %v1000
    %1345 = vmatpush.bf16.msra.mxu0 %v996
    %1346 = vmatmul.bf16.gmra.mxu0 %v102
    %v1347 = vpop.f32.mrf.mxu0
    %v1348 = vadd.f32 %v1334, %v1347
    %v1349 = vpop.f32.mrf.mxu0
    %v1350 = vadd.f32 %v1336, %v1349
    %1351 = vdwg.mxu0
    %1352 = vmatpush.bf16.msra.mxu0 %v1056
    %1353 = vmatpush.bf16.msra.mxu0 %v1052
    %1354 = vmatpush.bf16.msra.mxu0 %v1048
    %1355 = vmatpush.bf16.msra.mxu0 %v1044
    %1356 = vmatpush.bf16.msra.mxu0 %v1040
    %1357 = vmatpush.bf16.msra.mxu0 %v1036
    %1358 = vmatpush.bf16.msra.mxu0 %v1032
    %1359 = vmatpush.bf16.msra.mxu0 %v1028
    %1360 = vmatmul.bf16.gmra.mxu0 %v103
    %v1361 = vpop.f32.mrf.mxu0
    %v1362 = vadd.f32 %v1348, %v1361
    %v1363 = vpop.f32.mrf.mxu0
    %v1364 = vadd.f32 %v1350, %v1363
    %1365 = vdwg.mxu0
    %1366 = vmatpush.bf16.msra.mxu0 %v1088
    %1367 = vmatpush.bf16.msra.mxu0 %v1084
    %1368 = vmatpush.bf16.msra.mxu0 %v1080
    %1369 = vmatpush.bf16.msra.mxu0 %v1076
    %1370 = vmatpush.bf16.msra.mxu0 %v1072
    %1371 = vmatpush.bf16.msra.mxu0 %v1068
    %1372 = vmatpush.bf16.msra.mxu0 %v1064
    %1373 = vmatpush.bf16.msra.mxu0 %v1060
    %1374 = vmatmul.bf16.gmra.mxu0 %v104
    %v1375 = vpop.f32.mrf.mxu0
    %v1376 = vadd.f32 %v1362, %v1375
    %v1377 = vpop.f32.mrf.mxu0
    %v1378 = vadd.f32 %v1364, %v1377
    %1379 = vdwg.mxu0
    %1380 = vmatpush.bf16.msra.mxu0 0
    %1381 = vmatpush.bf16.msra.mxu0 0
    %1382 = vmatpush.bf16.msra.mxu0 0
    %1383 = vmatpush.bf16.msra.mxu0 0
    %1384 = vmatpush.bf16.msra.mxu0 0
    %1385 = vmatpush.bf16.msra.mxu0 0
    %1386 = vmatpush.bf16.msra.mxu0 0
    %1387 = vmatpush.bf16.msra.mxu0 %v1092
    %1388 = vmatmul.bf16.gmra.mxu0 %v1294
    %v1389 = vpop.f32.mrf.mxu0
    %v1390 = vadd.f32 %v1376, %v1389
    %v1391 = vpop.f32.mrf.mxu0
    %v1392 = vadd.f32 %v1378, %v1391
    %1393 = vdwg.mxu0
    %1394 = vmatpush.bf16.msra.mxu0 %v929
    %1395 = vmatpush.bf16.msra.mxu0 %v925
    %1396 = vmatpush.bf16.msra.mxu0 %v921
    %1397 = vmatpush.bf16.msra.mxu0 %v917
    %1398 = vmatpush.bf16.msra.mxu0 %v913
    %1399 = vmatpush.bf16.msra.mxu0 %v909
    %1400 = vmatpush.bf16.msra.mxu0 %v905
    %1401 = vmatpush.bf16.msra.mxu0 %v901
    %1402 = vmatmul.bf16.gmra.mxu0 %v99
    %v1403 = vpop.f32.mrf.mxu0
    %v1404 = vadd.f32 %v305, %v1403
    %v1405 = vpop.f32.mrf.mxu0
    %v1406 = vadd.f32 %v305, %v1405
    %1407 = vdwg.mxu0
    %1408 = vmatpush.bf16.msra.mxu0 %v961
    %1409 = vmatpush.bf16.msra.mxu0 %v957
    %1410 = vmatpush.bf16.msra.mxu0 %v953
    %1411 = vmatpush.bf16.msra.mxu0 %v949
    %1412 = vmatpush.bf16.msra.mxu0 %v945
    %1413 = vmatpush.bf16.msra.mxu0 %v941
    %1414 = vmatpush.bf16.msra.mxu0 %v937
    %1415 = vmatpush.bf16.msra.mxu0 %v933
    %1416 = vmatmul.bf16.gmra.mxu0 %v100
    %v1417 = vpop.f32.mrf.mxu0
    %v1418 = vadd.f32 %v1404, %v1417
    %v1419 = vpop.f32.mrf.mxu0
    %v1420 = vadd.f32 %v1406, %v1419
    %1421 = vdwg.mxu0
    %1422 = vmatpush.bf16.msra.mxu0 %v993
    %1423 = vmatpush.bf16.msra.mxu0 %v989
    %1424 = vmatpush.bf16.msra.mxu0 %v985
    %1425 = vmatpush.bf16.msra.mxu0 %v981
    %1426 = vmatpush.bf16.msra.mxu0 %v977
    %1427 = vmatpush.bf16.msra.mxu0 %v973
    %1428 = vmatpush.bf16.msra.mxu0 %v969
    %1429 = vmatpush.bf16.msra.mxu0 %v965
    %1430 = vmatmul.bf16.gmra.mxu0 %v101
    %v1431 = vpop.f32.mrf.mxu0
    %v1432 = vadd.f32 %v1418, %v1431
    %v1433 = vpop.f32.mrf.mxu0
    %v1434 = vadd.f32 %v1420, %v1433
    %1435 = vdwg.mxu0
    %1436 = vmatpush.bf16.msra.mxu0 %v1025
    %1437 = vmatpush.bf16.msra.mxu0 %v1021
    %1438 = vmatpush.bf16.msra.mxu0 %v1017
    %1439 = vmatpush.bf16.msra.mxu0 %v1013
    %1440 = vmatpush.bf16.msra.mxu0 %v1009
    %1441 = vmatpush.bf16.msra.mxu0 %v1005
    %1442 = vmatpush.bf16.msra.mxu0 %v1001
    %1443 = vmatpush.bf16.msra.mxu0 %v997
    %1444 = vmatmul.bf16.gmra.mxu0 %v102
    %v1445 = vpop.f32.mrf.mxu0
    %v1446 = vadd.f32 %v1432, %v1445
    %v1447 = vpop.f32.mrf.mxu0
    %v1448 = vadd.f32 %v1434, %v1447
    %1449 = vdwg.mxu0
    %1450 = vmatpush.bf16.msra.mxu0 %v1057
    %1451 = vmatpush.bf16.msra.mxu0 %v1053
    %1452 = vmatpush.bf16.msra.mxu0 %v1049
    %1453 = vmatpush.bf16.msra.mxu0 %v1045
    %1454 = vmatpush.bf16.msra.mxu0 %v1041
    %1455 = vmatpush.bf16.msra.mxu0 %v1037
    %1456 = vmatpush.bf16.msra.mxu0 %v1033
    %1457 = vmatpush.bf16.msra.mxu0 %v1029
    %1458 = vmatmul.bf16.gmra.mxu0 %v103
    %v1459 = vpop.f32.mrf.mxu0
    %v1460 = vadd.f32 %v1446, %v1459
    %v1461 = vpop.f32.mrf.mxu0
    %v1462 = vadd.f32 %v1448, %v1461
    %1463 = vdwg.mxu0
    %1464 = vmatpush.bf16.msra.mxu0 %v1089
    %1465 = vmatpush.bf16.msra.mxu0 %v1085
    %1466 = vmatpush.bf16.msra.mxu0 %v1081
    %1467 = vmatpush.bf16.msra.mxu0 %v1077
    %1468 = vmatpush.bf16.msra.mxu0 %v1073
    %1469 = vmatpush.bf16.msra.mxu0 %v1069
    %1470 = vmatpush.bf16.msra.mxu0 %v1065
    %1471 = vmatpush.bf16.msra.mxu0 %v1061
    %1472 = vmatmul.bf16.gmra.mxu0 %v104
    %v1473 = vpop.f32.mrf.mxu0
    %v1474 = vadd.f32 %v1460, %v1473
    %v1475 = vpop.f32.mrf.mxu0
    %v1476 = vadd.f32 %v1462, %v1475
    %1477 = vdwg.mxu0
    %1478 = vmatpush.bf16.msra.mxu0 0
    %1479 = vmatpush.bf16.msra.mxu0 0
    %1480 = vmatpush.bf16.msra.mxu0 0
    %1481 = vmatpush.bf16.msra.mxu0 0
    %1482 = vmatpush.bf16.msra.mxu0 0
    %1483 = vmatpush.bf16.msra.mxu0 0
    %1484 = vmatpush.bf16.msra.mxu0 0
    %1485 = vmatpush.bf16.msra.mxu0 %v1093
    %1486 = vmatmul.bf16.gmra.mxu0 %v1294
    %v1487 = vpop.f32.mrf.mxu0
    %v1488 = vadd.f32 %v1474, %v1487
    %v1489 = vpop.f32.mrf.mxu0
    %v1490 = vadd.f32 %v1476, %v1489
    %1491 = vdwg.mxu0
    %1492 = vmatpush.bf16.msra.mxu0 %v930
    %1493 = vmatpush.bf16.msra.mxu0 %v926
    %1494 = vmatpush.bf16.msra.mxu0 %v922
    %1495 = vmatpush.bf16.msra.mxu0 %v918
    %1496 = vmatpush.bf16.msra.mxu0 %v914
    %1497 = vmatpush.bf16.msra.mxu0 %v910
    %1498 = vmatpush.bf16.msra.mxu0 %v906
    %1499 = vmatpush.bf16.msra.mxu0 %v902
    %1500 = vmatmul.bf16.gmra.mxu0 %v99
    %v1501 = vpop.f32.mrf.mxu0
    %v1502 = vadd.f32 %v306, %v1501
    %v1503 = vpop.f32.mrf.mxu0
    %v1504 = vadd.f32 %v306, %v1503
    %1505 = vdwg.mxu0
    %1506 = vmatpush.bf16.msra.mxu0 %v962
    %1507 = vmatpush.bf16.msra.mxu0 %v958
    %1508 = vmatpush.bf16.msra.mxu0 %v954
    %1509 = vmatpush.bf16.msra.mxu0 %v950
    %1510 = vmatpush.bf16.msra.mxu0 %v946
    %1511 = vmatpush.bf16.msra.mxu0 %v942
    %1512 = vmatpush.bf16.msra.mxu0 %v938
    %1513 = vmatpush.bf16.msra.mxu0 %v934
    %1514 = vmatmul.bf16.gmra.mxu0 %v100
    %v1515 = vpop.f32.mrf.mxu0
    %v1516 = vadd.f32 %v1502, %v1515
    %v1517 = vpop.f32.mrf.mxu0
    %v1518 = vadd.f32 %v1504, %v1517
    %1519 = vdwg.mxu0
    %1520 = vmatpush.bf16.msra.mxu0 %v994
    %1521 = vmatpush.bf16.msra.mxu0 %v990
    %1522 = vmatpush.bf16.msra.mxu0 %v986
    %1523 = vmatpush.bf16.msra.mxu0 %v982
    %1524 = vmatpush.bf16.msra.mxu0 %v978
    %1525 = vmatpush.bf16.msra.mxu0 %v974
    %1526 = vmatpush.bf16.msra.mxu0 %v970
    %1527 = vmatpush.bf16.msra.mxu0 %v966
    %1528 = vmatmul.bf16.gmra.mxu0 %v101
    %v1529 = vpop.f32.mrf.mxu0
    %v1530 = vadd.f32 %v1516, %v1529
    %v1531 = vpop.f32.mrf.mxu0
    %v1532 = vadd.f32 %v1518, %v1531
    %1533 = vdwg.mxu0
    %1534 = vmatpush.bf16.msra.mxu0 %v1026
    %1535 = vmatpush.bf16.msra.mxu0 %v1022
    %1536 = vmatpush.bf16.msra.mxu0 %v1018
    %1537 = vmatpush.bf16.msra.mxu0 %v1014
    %1538 = vmatpush.bf16.msra.mxu0 %v1010
    %1539 = vmatpush.bf16.msra.mxu0 %v1006
    %1540 = vmatpush.bf16.msra.mxu0 %v1002
    %1541 = vmatpush.bf16.msra.mxu0 %v998
    %1542 = vmatmul.bf16.gmra.mxu0 %v102
    %v1543 = vpop.f32.mrf.mxu0
    %v1544 = vadd.f32 %v1530, %v1543
    %v1545 = vpop.f32.mrf.mxu0
    %v1546 = vadd.f32 %v1532, %v1545
    %1547 = vdwg.mxu0
    %1548 = vmatpush.bf16.msra.mxu0 %v1058
    %1549 = vmatpush.bf16.msra.mxu0 %v1054
    %1550 = vmatpush.bf16.msra.mxu0 %v1050
    %1551 = vmatpush.bf16.msra.mxu0 %v1046
    %1552 = vmatpush.bf16.msra.mxu0 %v1042
    %1553 = vmatpush.bf16.msra.mxu0 %v1038
    %1554 = vmatpush.bf16.msra.mxu0 %v1034
    %1555 = vmatpush.bf16.msra.mxu0 %v1030
    %1556 = vmatmul.bf16.gmra.mxu0 %v103
    %v1557 = vpop.f32.mrf.mxu0
    %v1558 = vadd.f32 %v1544, %v1557
    %v1559 = vpop.f32.mrf.mxu0
    %v1560 = vadd.f32 %v1546, %v1559
    %1561 = vdwg.mxu0
    %1562 = vmatpush.bf16.msra.mxu0 %v1090
    %1563 = vmatpush.bf16.msra.mxu0 %v1086
    %1564 = vmatpush.bf16.msra.mxu0 %v1082
    %1565 = vmatpush.bf16.msra.mxu0 %v1078
    %1566 = vmatpush.bf16.msra.mxu0 %v1074
    %1567 = vmatpush.bf16.msra.mxu0 %v1070
    %1568 = vmatpush.bf16.msra.mxu0 %v1066
    %1569 = vmatpush.bf16.msra.mxu0 %v1062
    %1570 = vmatmul.bf16.gmra.mxu0 %v104
    %v1571 = vpop.f32.mrf.mxu0
    %v1572 = vadd.f32 %v1558, %v1571
    %v1573 = vpop.f32.mrf.mxu0
    %v1574 = vadd.f32 %v1560, %v1573
    %1575 = vdwg.mxu0
    %1576 = vmatpush.bf16.msra.mxu0 0
    %1577 = vmatpush.bf16.msra.mxu0 0
    %1578 = vmatpush.bf16.msra.mxu0 0
    %1579 = vmatpush.bf16.msra.mxu0 0
    %1580 = vmatpush.bf16.msra.mxu0 0
    %1581 = vmatpush.bf16.msra.mxu0 0
    %1582 = vmatpush.bf16.msra.mxu0 0
    %1583 = vmatpush.bf16.msra.mxu0 %v1094
    %1584 = vmatmul.bf16.gmra.mxu0 %v1294
    %v1585 = vpop.f32.mrf.mxu0
    %v1586 = vadd.f32 %v1572, %v1585
    %v1587 = vpop.f32.mrf.mxu0
    %v1588 = vadd.f32 %v1574, %v1587
    %1589 = vdwg.mxu0
    %1590 = vmatpush.bf16.msra.mxu0 %v931
    %1591 = vmatpush.bf16.msra.mxu0 %v927
    %1592 = vmatpush.bf16.msra.mxu0 %v923
    %1593 = vmatpush.bf16.msra.mxu0 %v919
    %1594 = vmatpush.bf16.msra.mxu0 %v915
    %1595 = vmatpush.bf16.msra.mxu0 %v911
    %1596 = vmatpush.bf16.msra.mxu0 %v907
    %1597 = vmatpush.bf16.msra.mxu0 %v903
    %1598 = vmatmul.bf16.gmra.mxu0 %v99
    %v1599 = vpop.f32.mrf.mxu0
    %v1600 = vadd.f32 %v307, %v1599
    %v1601 = vpop.f32.mrf.mxu0
    %v1602 = vadd.f32 %v307, %v1601
    %1603 = vdwg.mxu0
    %1604 = vmatpush.bf16.msra.mxu0 %v963
    %1605 = vmatpush.bf16.msra.mxu0 %v959
    %1606 = vmatpush.bf16.msra.mxu0 %v955
    %1607 = vmatpush.bf16.msra.mxu0 %v951
    %1608 = vmatpush.bf16.msra.mxu0 %v947
    %1609 = vmatpush.bf16.msra.mxu0 %v943
    %1610 = vmatpush.bf16.msra.mxu0 %v939
    %1611 = vmatpush.bf16.msra.mxu0 %v935
    %1612 = vmatmul.bf16.gmra.mxu0 %v100
    %v1613 = vpop.f32.mrf.mxu0
    %v1614 = vadd.f32 %v1600, %v1613
    %v1615 = vpop.f32.mrf.mxu0
    %v1616 = vadd.f32 %v1602, %v1615
    %1617 = vdwg.mxu0
    %1618 = vmatpush.bf16.msra.mxu0 %v995
    %1619 = vmatpush.bf16.msra.mxu0 %v991
    %1620 = vmatpush.bf16.msra.mxu0 %v987
    %1621 = vmatpush.bf16.msra.mxu0 %v983
    %1622 = vmatpush.bf16.msra.mxu0 %v979
    %1623 = vmatpush.bf16.msra.mxu0 %v975
    %1624 = vmatpush.bf16.msra.mxu0 %v971
    %1625 = vmatpush.bf16.msra.mxu0 %v967
    %1626 = vmatmul.bf16.gmra.mxu0 %v101
    %v1627 = vpop.f32.mrf.mxu0
    %v1628 = vadd.f32 %v1614, %v1627
    %v1629 = vpop.f32.mrf.mxu0
    %v1630 = vadd.f32 %v1616, %v1629
    %1631 = vdwg.mxu0
    %1632 = vmatpush.bf16.msra.mxu0 %v1027
    %1633 = vmatpush.bf16.msra.mxu0 %v1023
    %1634 = vmatpush.bf16.msra.mxu0 %v1019
    %1635 = vmatpush.bf16.msra.mxu0 %v1015
    %1636 = vmatpush.bf16.msra.mxu0 %v1011
    %1637 = vmatpush.bf16.msra.mxu0 %v1007
    %1638 = vmatpush.bf16.msra.mxu0 %v1003
    %1639 = vmatpush.bf16.msra.mxu0 %v999
    %1640 = vmatmul.bf16.gmra.mxu0 %v102
    %v1641 = vpop.f32.mrf.mxu0
    %v1642 = vadd.f32 %v1628, %v1641
    %v1643 = vpop.f32.mrf.mxu0
    %v1644 = vadd.f32 %v1630, %v1643
    %1645 = vdwg.mxu0
    %1646 = vmatpush.bf16.msra.mxu0 %v1059
    %1647 = vmatpush.bf16.msra.mxu0 %v1055
    %1648 = vmatpush.bf16.msra.mxu0 %v1051
    %1649 = vmatpush.bf16.msra.mxu0 %v1047
    %1650 = vmatpush.bf16.msra.mxu0 %v1043
    %1651 = vmatpush.bf16.msra.mxu0 %v1039
    %1652 = vmatpush.bf16.msra.mxu0 %v1035
    %1653 = vmatpush.bf16.msra.mxu0 %v1031
    %1654 = vmatmul.bf16.gmra.mxu0 %v103
    %v1655 = vpop.f32.mrf.mxu0
    %v1656 = vadd.f32 %v1642, %v1655
    %v1657 = vpop.f32.mrf.mxu0
    %v1658 = vadd.f32 %v1644, %v1657
    %1659 = vdwg.mxu0
    %1660 = vmatpush.bf16.msra.mxu0 %v1091
    %1661 = vmatpush.bf16.msra.mxu0 %v1087
    %1662 = vmatpush.bf16.msra.mxu0 %v1083
    %1663 = vmatpush.bf16.msra.mxu0 %v1079
    %1664 = vmatpush.bf16.msra.mxu0 %v1075
    %1665 = vmatpush.bf16.msra.mxu0 %v1071
    %1666 = vmatpush.bf16.msra.mxu0 %v1067
    %1667 = vmatpush.bf16.msra.mxu0 %v1063
    %1668 = vmatmul.bf16.gmra.mxu0 %v104
    %v1669 = vpop.f32.mrf.mxu0
    %v1670 = vadd.f32 %v1656, %v1669
    %v1671 = vpop.f32.mrf.mxu0
    %v1672 = vadd.f32 %v1658, %v1671
    %1673 = vdwg.mxu0
    %1674 = vmatpush.bf16.msra.mxu0 0
    %1675 = vmatpush.bf16.msra.mxu0 0
    %1676 = vmatpush.bf16.msra.mxu0 0
    %1677 = vmatpush.bf16.msra.mxu0 0
    %1678 = vmatpush.bf16.msra.mxu0 0
    %1679 = vmatpush.bf16.msra.mxu0 0
    %1680 = vmatpush.bf16.msra.mxu0 0
    %1681 = vmatpush.bf16.msra.mxu0 %v1095
    %1682 = vmatmul.bf16.gmra.mxu0 %v1294
    %v1683 = vpop.f32.mrf.mxu0
    %v1684 = vadd.f32 %v1670, %v1683
    %v1685 = vpop.f32.mrf.mxu0
    %v1686 = vadd.f32 %v1672, %v1685
    %1687 = vdwg.mxu0
    %v1688 = vadd.f32 %v1390, %v1488
    %v1689 = vadd.f32 %v1688, %v1586
    %v1690 = vadd.f32 %v1689, %v1684
    %1691 = vadd.xlane.f32.xlu0 %v1690
    %v1692 = vpop.xlane.xlu0 %1691
    %v1693 = vadd.f32 %v1392, %v1490
    %v1694 = vadd.f32 %v1693, %v1588
    %v1695 = vadd.f32 %v1694, %v1686
    %1696 = vadd.xlane.f32.xlu0 %v1695
    %v1697 = vpop.xlane.xlu0 %1696
    %v1698 = vrcp.pop 512.0
    %v1699 = vmul.f32 512.0, %v1698
    %v1700 = vsub.f32 1.0, %v1699
    %v1701 = vmul.f32 %v1698, %v1700
    %v1702 = vadd.f32 %v1698, %v1701
    %vm1703 = vweird.f32 %v1698
    %v1704 = vsel %vm1703, %v1698, %v1702
    %v1705 = vmul.f32 %v1692, %v1704
    %v1706 = vmul.f32 %v1697, %v1704
    %v1707 = vsub.f32 %v1390, %v1705
    %v1708 = vsub.f32 %v1488, %v1705
    %v1709 = vsub.f32 %v1586, %v1705
    %v1710 = vsub.f32 %v1684, %v1705
    %v1711 = vsub.f32 %v1392, %v1706
    %v1712 = vsub.f32 %v1490, %v1706
    %v1713 = vsub.f32 %v1588, %v1706
    %v1714 = vsub.f32 %v1686, %v1706
    %v1715 = vmul.f32 %v1707, %v1707
    %v1716 = vmul.f32 %v1708, %v1708
    %v1717 = vmul.f32 %v1709, %v1709
    %v1718 = vmul.f32 %v1710, %v1710
    %v1719 = vmul.f32 %v1711, %v1711
    %v1720 = vmul.f32 %v1712, %v1712
    %v1721 = vmul.f32 %v1713, %v1713
    %v1722 = vmul.f32 %v1714, %v1714
    %v1723 = vadd.f32 %v1715, %v1716
    %v1724 = vadd.f32 %v1723, %v1717
    %v1725 = vadd.f32 %v1724, %v1718
    %1726 = vadd.xlane.f32.xlu0 %v1725
    %v1727 = vpop.xlane.xlu0 %1726
    %v1728 = vadd.f32 %v1719, %v1720
    %v1729 = vadd.f32 %v1728, %v1721
    %v1730 = vadd.f32 %v1729, %v1722
    %1731 = vadd.xlane.f32.xlu0 %v1730
    %v1732 = vpop.xlane.xlu0 %1731
    %v1733 = vmul.f32 %v1727, %v1704
    %v1734 = vmul.f32 %v1732, %v1704
    %v1735 = vadd.f32 %v1733, 1e-05
    %v1736 = vadd.f32 %v1734, 1e-05
    %v1737 = vrsqrt.pop %v1735
    %v1738 = vmul.f32 %v1737, %v1735
    %v1739 = vmul.f32 %v1738, %v1737
    %v1740 = vmul.f32 0.5, %v1739
    %v1741 = vsub.f32 1.5, %v1740
    %v1742 = vmul.f32 %v1737, %v1741
    %vm1743 = vweird.f32 %v1735
    %vm1744 = vweird.f32 %v1737
    %vm1745 = vmor %vm1743, %vm1744
    %v1746 = vsel %vm1745, %v1737, %v1742
    %v1747 = vrsqrt.pop %v1736
    %v1748 = vmul.f32 %v1747, %v1736
    %v1749 = vmul.f32 %v1748, %v1747
    %v1750 = vmul.f32 0.5, %v1749
    %v1751 = vsub.f32 1.5, %v1750
    %v1752 = vmul.f32 %v1747, %v1751
    %vm1753 = vweird.f32 %v1736
    %vm1754 = vweird.f32 %v1747
    %vm1755 = vmor %vm1753, %vm1754
    %v1756 = vsel %vm1755, %v1747, %v1752
    %v1757 = vmul.f32 %v1707, %v1746
    %v1758 = vmul.f32 %v1708, %v1746
    %v1759 = vmul.f32 %v1709, %v1746
    %v1760 = vmul.f32 %v1710, %v1746
    %v1761 = vmul.f32 %v1711, %v1756
    %v1762 = vmul.f32 %v1712, %v1756
    %v1763 = vmul.f32 %v1713, %v1756
    %v1764 = vmul.f32 %v1714, %v1756
    %v1765 = vpack.c.bf16 %v1758, %v1757
    %v1766 = vpack.c.bf16 %v1760, %v1759
    %v1767 = vpack.c.bf16 %v1762, %v1761
    %v1768 = vpack.c.bf16 %v1764, %v1763
    %v1769 = vld [vmem:[%s3] sm:$0xf]
    %1771 = vst [vmem:[#allocation1] ss:$9 sm:$0xff] %v1769
    %v1772 = vld [vmem:[#allocation1] sm:$0xff]
    %v1773 = vld [vmem:[#allocation1 + $0x9] sm:$0xff]
    %v1774 = vld [vmem:[#allocation1 + $0x12] sm:$0xff]
    %v1775 = vld [vmem:[#allocation1 + $0x1b] sm:$0xff]
    %v1776 = vpack.i.b16 %v1772, %v1772
    %v1778 = vperm.slane %v1776, 0
    %v1779 = vpack.i.b16 %v1773, %v1773
    %v1781 = vperm.slane %v1779, 0
    %v1782 = vpack.i.b16 %v1774, %v1774
    %v1784 = vperm.slane %v1782, 0
    %v1785 = vpack.i.b16 %v1775, %v1775
    %v1787 = vperm.slane %v1785, 0
    %v1788 = vunpack.c.l.bf16 %v1765
    %v1789 = vunpack.c.h.bf16 %v1765
    %v1790 = vunpack.c.l.bf16 %v1766
    %v1791 = vunpack.c.h.bf16 %v1766
    %v1792 = vunpack.c.l.bf16 %v1767
    %v1793 = vunpack.c.h.bf16 %v1767
    %v1794 = vunpack.c.l.bf16 %v1768
    %v1795 = vunpack.c.h.bf16 %v1768
    %v1796 = vunpack.c.l.bf16 %v1778
    %v1797 = vunpack.c.l.bf16 %v1781
    %v1798 = vunpack.c.l.bf16 %v1784
    %v1799 = vunpack.c.l.bf16 %v1787
    %v1800 = vmul.f32 %v1788, %v1796
    %v1801 = vmul.f32 %v1789, %v1797
    %v1802 = vmul.f32 %v1790, %v1798
    %v1803 = vmul.f32 %v1791, %v1799
    %v1804 = vmul.f32 %v1792, %v1796
    %v1805 = vmul.f32 %v1793, %v1797
    %v1806 = vmul.f32 %v1794, %v1798
    %v1807 = vmul.f32 %v1795, %v1799
    %v1808 = vpack.c.bf16 %v1801, %v1800
    %v1809 = vpack.c.bf16 %v1803, %v1802
    %v1810 = vpack.c.bf16 %v1805, %v1804
    %v1811 = vpack.c.bf16 %v1807, %v1806
    %v1812 = vld [vmem:[%s4] sm:$0xf]
    %1814 = vst [vmem:[#allocation1] ss:$9 sm:$0xff] %v1812
    %v1815 = vld [vmem:[#allocation1] sm:$0xff]
    %v1816 = vld [vmem:[#allocation1 + $0x9] sm:$0xff]
    %v1817 = vld [vmem:[#allocation1 + $0x12] sm:$0xff]
    %v1818 = vld [vmem:[#allocation1 + $0x1b] sm:$0xff]
    %v1819 = vpack.i.b16 %v1815, %v1815
    %v1821 = vperm.slane %v1819, 0
    %v1822 = vpack.i.b16 %v1816, %v1816
    %v1824 = vperm.slane %v1822, 0
    %v1825 = vpack.i.b16 %v1817, %v1817
    %v1827 = vperm.slane %v1825, 0
    %v1828 = vpack.i.b16 %v1818, %v1818
    %v1830 = vperm.slane %v1828, 0
    %v1831 = vunpack.c.l.bf16 %v1808
    %v1832 = vunpack.c.h.bf16 %v1808
    %v1833 = vunpack.c.l.bf16 %v1809
    %v1834 = vunpack.c.h.bf16 %v1809
    %v1835 = vunpack.c.l.bf16 %v1810
    %v1836 = vunpack.c.h.bf16 %v1810
    %v1837 = vunpack.c.l.bf16 %v1811
    %v1838 = vunpack.c.h.bf16 %v1811
    %v1839 = vunpack.c.l.bf16 %v1821
    %v1840 = vunpack.c.l.bf16 %v1824
    %v1841 = vunpack.c.l.bf16 %v1827
    %v1842 = vunpack.c.l.bf16 %v1830
    %v1843 = vadd.f32 %v1831, %v1839
    %v1844 = vadd.f32 %v1832, %v1840
    %v1845 = vadd.f32 %v1833, %v1841
    %v1846 = vadd.f32 %v1834, %v1842
    %v1847 = vadd.f32 %v1835, %v1839
    %v1848 = vadd.f32 %v1836, %v1840
    %v1849 = vadd.f32 %v1837, %v1841
    %v1850 = vadd.f32 %v1838, %v1842
    %v1851 = vpack.c.bf16 %v1844, %v1843
    %v1852 = vpack.c.bf16 %v1846, %v1845
    %v1853 = vpack.c.bf16 %v1848, %v1847
    %v1854 = vpack.c.bf16 %v1850, %v1849
    %v1855 = vunpack.c.l.bf16 %v1851
    %v1856 = vunpack.c.h.bf16 %v1851
    %v1857 = vunpack.c.l.bf16 %v1852
    %v1858 = vunpack.c.h.bf16 %v1852
    %v1859 = vunpack.c.l.bf16 %v1853
    %v1860 = vunpack.c.h.bf16 %v1853
    %v1861 = vunpack.c.l.bf16 %v1854
    %v1862 = vunpack.c.h.bf16 %v1854
    %v1863 = vmul.f32 %v1855, 0.010009766
    %v1864 = vmul.f32 %v1856, 0.010009766
    %v1865 = vmul.f32 %v1857, 0.010009766
    %v1866 = vmul.f32 %v1858, 0.010009766
    %v1867 = vmul.f32 %v1859, 0.010009766
    %v1868 = vmul.f32 %v1860, 0.010009766
    %v1869 = vmul.f32 %v1861, 0.010009766
    %v1870 = vmul.f32 %v1862, 0.010009766
    %v1871 = vpack.c.bf16 %v1864, %v1863
    %v1872 = vpack.c.bf16 %v1866, %v1865
    %v1873 = vpack.c.bf16 %v1868, %v1867
    %v1874 = vpack.c.bf16 %v1870, %v1869
    %v1875 = vunpack.c.l.bf16 %v1871
    %v1876 = vunpack.c.h.bf16 %v1871
    %v1877 = vunpack.c.l.bf16 %v1872
    %v1878 = vunpack.c.h.bf16 %v1872
    %v1879 = vunpack.c.l.bf16 %v1873
    %v1880 = vunpack.c.h.bf16 %v1873
    %v1881 = vunpack.c.l.bf16 %v1874
    %v1882 = vunpack.c.h.bf16 %v1874
    %v1883 = vmax.f32 %v1855, %v1875
    %v1884 = vmax.f32 %v1856, %v1876
    %v1885 = vmax.f32 %v1857, %v1877
    %v1886 = vmax.f32 %v1858, %v1878
    %v1887 = vmax.f32 %v1859, %v1879
    %v1888 = vmax.f32 %v1860, %v1880
    %v1889 = vmax.f32 %v1861, %v1881
    %v1890 = vmax.f32 %v1862, %v1882
    %v1891 = vpack.c.bf16 %v1887, %v1883
    %v1892 = vpack.c.bf16 %v1888, %v1884
    %v1893 = vpack.c.bf16 %v1889, %v1885
    %v1894 = vpack.c.bf16 %v1890, %v1886
    %v1895 = vld [vmem:[#allocation5] sm:$0xff]
    %v1896 = vld [vmem:[#allocation5 + $0x8] sm:$0xff]
    %v1897 = vld [vmem:[#allocation5 + $0x10] sm:$0xff]
    %v1898 = vld [vmem:[#allocation5 + $0x18] sm:$0xff]
    %v1899 = vld [vmem:[#allocation5 + $0x20] sm:$0xff]
    %v1900 = vld [vmem:[#allocation5 + $0x28] sm:$0xff]
    %v1901 = vld [vmem:[#allocation5 + $0x30] sm:$0xff]
    %v1902 = vld [vmem:[#allocation5 + $0x38] sm:$0xff]
    %v1903 = vld [vmem:[#allocation5 + $0x40] sm:$0xff]
    %v1904 = vld [vmem:[#allocation5 + $0x48] sm:$0xff]
    %v1905 = vld [vmem:[#allocation5 + $0x50] sm:$0xff]
    %v1906 = vld [vmem:[#allocation5 + $0x58] sm:$0xff]
    %v1907 = vld [vmem:[#allocation5 + $0x60] sm:$0xff]
    %v1908 = vld [vmem:[#allocation5 + $0x68] sm:$0xff]
    %v1909 = vld [vmem:[#allocation5 + $0x70] sm:$0xff]
    %v1910 = vld [vmem:[#allocation5 + $0x78] sm:$0xff]
    %v1911 = vld [vmem:[#allocation5 + $0x80] sm:$0xff]
    %v1912 = vld [vmem:[#allocation5 + $0x88] sm:$0xff]
    %v1913 = vld [vmem:[#allocation5 + $0x90] sm:$0xff]
    %v1914 = vld [vmem:[#allocation5 + $0x98] sm:$0xff]
    %v1915 = vld [vmem:[#allocation5 + $0xa0] sm:$0xff]
    %v1916 = vld [vmem:[#allocation5 + $0xa8] sm:$0xff]
    %v1917 = vld [vmem:[#allocation5 + $0xb0] sm:$0xff]
    %v1918 = vld [vmem:[#allocation5 + $0xb8] sm:$0xff]
    %v1919 = vld [vmem:[#allocation5 + $0xc0] sm:$0xff]
    %v1920 = vld [vmem:[#allocation5 + $0xc8] sm:$0xff]
    %v1921 = vld [vmem:[#allocation5 + $0xd0] sm:$0xff]
    %v1922 = vld [vmem:[#allocation5 + $0xd8] sm:$0xff]
    %v1923 = vld [vmem:[#allocation5 + $0xe0] sm:$0xff]
    %v1924 = vld [vmem:[#allocation5 + $0xe8] sm:$0xff]
    %v1925 = vld [vmem:[#allocation5 + $0xf0] sm:$0xff]
    %v1926 = vld [vmem:[#allocation5 + $0xf8] sm:$0xff]
    %v1927 = vld [vmem:[#allocation5 + $0x100] sm:$0xff]
    %v1928 = vld [vmem:[#allocation5 + $0x108] sm:$0xff]
    %v1929 = vld [vmem:[#allocation5 + $0x110] sm:$0xff]
    %v1930 = vld [vmem:[#allocation5 + $0x118] sm:$0xff]
    %v1931 = vld [vmem:[#allocation5 + $0x120] sm:$0xff]
    %v1932 = vld [vmem:[#allocation5 + $0x128] sm:$0xff]
    %v1933 = vld [vmem:[#allocation5 + $0x130] sm:$0xff]
    %v1934 = vld [vmem:[#allocation5 + $0x138] sm:$0xff]
    %v1935 = vld [vmem:[#allocation5 + $0x140] sm:$0xff]
    %v1936 = vld [vmem:[#allocation5 + $0x148] sm:$0xff]
    %v1937 = vld [vmem:[#allocation5 + $0x150] sm:$0xff]
    %v1938 = vld [vmem:[#allocation5 + $0x158] sm:$0xff]
    %v1939 = vld [vmem:[#allocation5 + $0x160] sm:$0xff]
    %v1940 = vld [vmem:[#allocation5 + $0x168] sm:$0xff]
    %v1941 = vld [vmem:[#allocation5 + $0x170] sm:$0xff]
    %v1942 = vld [vmem:[#allocation5 + $0x178] sm:$0xff]
    %v1943 = vld [vmem:[#allocation5 + $0x180] sm:$0xff]
    %v1944 = vld [vmem:[#allocation5 + $0x188] sm:$0xff]
    %v1945 = vld [vmem:[#allocation5 + $0x190] sm:$0xff]
    %v1946 = vld [vmem:[#allocation5 + $0x198] sm:$0xff]
    %v1947 = vld [vmem:[#allocation5 + $0x1a0] sm:$0xff]
    %v1948 = vld [vmem:[#allocation5 + $0x1a8] sm:$0xff]
    %v1949 = vld [vmem:[#allocation5 + $0x1b0] sm:$0xff]
    %v1950 = vld [vmem:[#allocation5 + $0x1b8] sm:$0xff]
    %v1951 = vld [vmem:[#allocation5 + $0x1c0] sm:$0xff]
    %v1952 = vld [vmem:[#allocation5 + $0x1c8] sm:$0xff]
    %v1953 = vld [vmem:[#allocation5 + $0x1d0] sm:$0xff]
    %v1954 = vld [vmem:[#allocation5 + $0x1d8] sm:$0xff]
    %v1955 = vld [vmem:[#allocation5 + $0x1e0] sm:$0xff]
    %v1956 = vld [vmem:[#allocation5 + $0x1e8] sm:$0xff]
    %v1957 = vld [vmem:[#allocation5 + $0x1f0] sm:$0xff]
    %v1958 = vld [vmem:[#allocation5 + $0x1f8] sm:$0xff]
    %v1959 = vld [vmem:[%s6] sm:$0x3]
    %v1961 = vperm.slane %v1959, 0
    %v1962 = vperm.slane %v1959, 1
    %v2029 = vunpack.c.l.b16 %v1895
    %v2030 = vunpack.c.h.b16 %v1895
    %v2031 = vunpack.c.l.b16 %v1896
    %v2032 = vunpack.c.h.b16 %v1896
    %v2033 = vunpack.c.l.b16 %v1897
    %v2034 = vunpack.c.h.b16 %v1897
    %v2035 = vunpack.c.l.b16 %v1898
    %v2036 = vunpack.c.h.b16 %v1898
    %v2037 = vunpack.c.l.b16 %v1899
    %v2038 = vunpack.c.h.b16 %v1899
    %v2039 = vunpack.c.l.b16 %v1900
    %v2040 = vunpack.c.h.b16 %v1900
    %v2041 = vunpack.c.l.b16 %v1901
    %v2042 = vunpack.c.h.b16 %v1901
    %v2043 = vunpack.c.l.b16 %v1902
    %v2044 = vunpack.c.h.b16 %v1902
    %v2045 = vunpack.c.l.b16 %v1903
    %v2046 = vunpack.c.h.b16 %v1903
    %v2047 = vunpack.c.l.b16 %v1904
    %v2048 = vunpack.c.h.b16 %v1904
    %v2049 = vunpack.c.l.b16 %v1905
    %v2050 = vunpack.c.h.b16 %v1905
    %v2051 = vunpack.c.l.b16 %v1906
    %v2052 = vunpack.c.h.b16 %v1906
    %v2053 = vunpack.c.l.b16 %v1907
    %v2054 = vunpack.c.h.b16 %v1907
    %v2055 = vunpack.c.l.b16 %v1908
    %v2056 = vunpack.c.h.b16 %v1908
    %v2057 = vunpack.c.l.b16 %v1909
    %v2058 = vunpack.c.h.b16 %v1909
    %v2059 = vunpack.c.l.b16 %v1910
    %v2060 = vunpack.c.h.b16 %v1910
    %v2061 = vunpack.c.l.b16 %v1911
    %v2062 = vunpack.c.h.b16 %v1911
    %v2063 = vunpack.c.l.b16 %v1912
    %v2064 = vunpack.c.h.b16 %v1912
    %v2065 = vunpack.c.l.b16 %v1913
    %v2066 = vunpack.c.h.b16 %v1913
    %v2067 = vunpack.c.l.b16 %v1914
    %v2068 = vunpack.c.h.b16 %v1914
    %v2069 = vunpack.c.l.b16 %v1915
    %v2070 = vunpack.c.h.b16 %v1915
    %v2071 = vunpack.c.l.b16 %v1916
    %v2072 = vunpack.c.h.b16 %v1916
    %v2073 = vunpack.c.l.b16 %v1917
    %v2074 = vunpack.c.h.b16 %v1917
    %v2075 = vunpack.c.l.b16 %v1918
    %v2076 = vunpack.c.h.b16 %v1918
    %v2077 = vunpack.c.l.b16 %v1919
    %v2078 = vunpack.c.h.b16 %v1919
    %v2079 = vunpack.c.l.b16 %v1920
    %v2080 = vunpack.c.h.b16 %v1920
    %v2081 = vunpack.c.l.b16 %v1921
    %v2082 = vunpack.c.h.b16 %v1921
    %v2083 = vunpack.c.l.b16 %v1922
    %v2084 = vunpack.c.h.b16 %v1922
    %v2085 = vunpack.c.l.b16 %v1923
    %v2086 = vunpack.c.h.b16 %v1923
    %v2087 = vunpack.c.l.b16 %v1924
    %v2088 = vunpack.c.h.b16 %v1924
    %v2089 = vunpack.c.l.b16 %v1925
    %v2090 = vunpack.c.h.b16 %v1925
    %v2091 = vunpack.c.l.b16 %v1926
    %v2092 = vunpack.c.h.b16 %v1926
    %v2093 = vunpack.c.l.b16 %v1927
    %v2094 = vunpack.c.h.b16 %v1927
    %v2095 = vunpack.c.l.b16 %v1928
    %v2096 = vunpack.c.h.b16 %v1928
    %v2097 = vunpack.c.l.b16 %v1929
    %v2098 = vunpack.c.h.b16 %v1929
    %v2099 = vunpack.c.l.b16 %v1930
    %v2100 = vunpack.c.h.b16 %v1930
    %v2101 = vunpack.c.l.b16 %v1931
    %v2102 = vunpack.c.h.b16 %v1931
    %v2103 = vunpack.c.l.b16 %v1932
    %v2104 = vunpack.c.h.b16 %v1932
    %v2105 = vunpack.c.l.b16 %v1933
    %v2106 = vunpack.c.h.b16 %v1933
    %v2107 = vunpack.c.l.b16 %v1934
    %v2108 = vunpack.c.h.b16 %v1934
    %v2109 = vunpack.c.l.b16 %v1935
    %v2110 = vunpack.c.h.b16 %v1935
    %v2111 = vunpack.c.l.b16 %v1936
    %v2112 = vunpack.c.h.b16 %v1936
    %v2113 = vunpack.c.l.b16 %v1937
    %v2114 = vunpack.c.h.b16 %v1937
    %v2115 = vunpack.c.l.b16 %v1938
    %v2116 = vunpack.c.h.b16 %v1938
    %v2117 = vunpack.c.l.b16 %v1939
    %v2118 = vunpack.c.h.b16 %v1939
    %v2119 = vunpack.c.l.b16 %v1940
    %v2120 = vunpack.c.h.b16 %v1940
    %v2121 = vunpack.c.l.b16 %v1941
    %v2122 = vunpack.c.h.b16 %v1941
    %v2123 = vunpack.c.l.b16 %v1942
    %v2124 = vunpack.c.h.b16 %v1942
    %v2125 = vunpack.c.l.b16 %v1943
    %v2126 = vunpack.c.h.b16 %v1943
    %v2127 = vunpack.c.l.b16 %v1944
    %v2128 = vunpack.c.h.b16 %v1944
    %v2129 = vunpack.c.l.b16 %v1945
    %v2130 = vunpack.c.h.b16 %v1945
    %v2131 = vunpack.c.l.b16 %v1946
    %v2132 = vunpack.c.h.b16 %v1946
    %v2133 = vunpack.c.l.b16 %v1947
    %v2134 = vunpack.c.h.b16 %v1947
    %v2135 = vunpack.c.l.b16 %v1948
    %v2136 = vunpack.c.h.b16 %v1948
    %v2137 = vunpack.c.l.b16 %v1949
    %v2138 = vunpack.c.h.b16 %v1949
    %v2139 = vunpack.c.l.b16 %v1950
    %v2140 = vunpack.c.h.b16 %v1950
    %v2141 = vunpack.c.l.b16 %v1951
    %v2142 = vunpack.c.h.b16 %v1951
    %v2143 = vunpack.c.l.b16 %v1952
    %v2144 = vunpack.c.h.b16 %v1952
    %v2145 = vunpack.c.l.b16 %v1953
    %v2146 = vunpack.c.h.b16 %v1953
    %v2147 = vunpack.c.l.b16 %v1954
    %v2148 = vunpack.c.h.b16 %v1954
    %v2149 = vunpack.c.l.b16 %v1955
    %v2150 = vunpack.c.h.b16 %v1955
    %v2151 = vunpack.c.l.b16 %v1956
    %v2152 = vunpack.c.h.b16 %v1956
    %v2153 = vunpack.c.l.b16 %v1957
    %v2154 = vunpack.c.h.b16 %v1957
    %v2155 = vunpack.c.l.b16 %v1958
    %v2156 = vunpack.c.h.b16 %v1958
    %v2157 = vpack.c.b16 %v2031, %v2029
    %v2158 = vpack.c.b16 %v2032, %v2030
    %v2159 = vpack.c.b16 %v2035, %v2033
    %v2160 = vpack.c.b16 %v2036, %v2034
    %v2161 = vpack.c.b16 %v2039, %v2037
    %v2162 = vpack.c.b16 %v2040, %v2038
    %v2163 = vpack.c.b16 %v2043, %v2041
    %v2164 = vpack.c.b16 %v2044, %v2042
    %v2165 = vpack.c.b16 %v2047, %v2045
    %v2166 = vpack.c.b16 %v2048, %v2046
    %v2167 = vpack.c.b16 %v2051, %v2049
    %v2168 = vpack.c.b16 %v2052, %v2050
    %v2169 = vpack.c.b16 %v2055, %v2053
    %v2170 = vpack.c.b16 %v2056, %v2054
    %v2171 = vpack.c.b16 %v2059, %v2057
    %v2172 = vpack.c.b16 %v2060, %v2058
    %v2173 = vpack.c.b16 %v2063, %v2061
    %v2174 = vpack.c.b16 %v2064, %v2062
    %v2175 = vpack.c.b16 %v2067, %v2065
    %v2176 = vpack.c.b16 %v2068, %v2066
    %v2177 = vpack.c.b16 %v2071, %v2069
    %v2178 = vpack.c.b16 %v2072, %v2070
    %v2179 = vpack.c.b16 %v2075, %v2073
    %v2180 = vpack.c.b16 %v2076, %v2074
    %v2181 = vpack.c.b16 %v2079, %v2077
    %v2182 = vpack.c.b16 %v2080, %v2078
    %v2183 = vpack.c.b16 %v2083, %v2081
    %v2184 = vpack.c.b16 %v2084, %v2082
    %v2185 = vpack.c.b16 %v2087, %v2085
    %v2186 = vpack.c.b16 %v2088, %v2086
    %v2187 = vpack.c.b16 %v2091, %v2089
    %v2188 = vpack.c.b16 %v2092, %v2090
    %v2189 = vpack.c.b16 %v2095, %v2093
    %v2190 = vpack.c.b16 %v2096, %v2094
    %v2191 = vpack.c.b16 %v2099, %v2097
    %v2192 = vpack.c.b16 %v2100, %v2098
    %v2193 = vpack.c.b16 %v2103, %v2101
    %v2194 = vpack.c.b16 %v2104, %v2102
    %v2195 = vpack.c.b16 %v2107, %v2105
    %v2196 = vpack.c.b16 %v2108, %v2106
    %v2197 = vpack.c.b16 %v2111, %v2109
    %v2198 = vpack.c.b16 %v2112, %v2110
    %v2199 = vpack.c.b16 %v2115, %v2113
    %v2200 = vpack.c.b16 %v2116, %v2114
    %v2201 = vpack.c.b16 %v2119, %v2117
    %v2202 = vpack.c.b16 %v2120, %v2118
    %v2203 = vpack.c.b16 %v2123, %v2121
    %v2204 = vpack.c.b16 %v2124, %v2122
    %v2205 = vpack.c.b16 %v2127, %v2125
    %v2206 = vpack.c.b16 %v2128, %v2126
    %v2207 = vpack.c.b16 %v2131, %v2129
    %v2208 = vpack.c.b16 %v2132, %v2130
    %v2209 = vpack.c.b16 %v2135, %v2133
    %v2210 = vpack.c.b16 %v2136, %v2134
    %v2211 = vpack.c.b16 %v2139, %v2137
    %v2212 = vpack.c.b16 %v2140, %v2138
    %v2213 = vpack.c.b16 %v2143, %v2141
    %v2214 = vpack.c.b16 %v2144, %v2142
    %v2215 = vpack.c.b16 %v2147, %v2145
    %v2216 = vpack.c.b16 %v2148, %v2146
    %v2217 = vpack.c.b16 %v2151, %v2149
    %v2218 = vpack.c.b16 %v2152, %v2150
    %v2219 = vpack.c.b16 %v2155, %v2153
    %v2220 = vpack.c.b16 %v2156, %v2154
    %2285 = vmatpush.bf16.msra.mxu0 %v2171
    %2286 = vmatpush.bf16.msra.mxu0 %v2169
    %2287 = vmatpush.bf16.msra.mxu0 %v2167
    %2288 = vmatpush.bf16.msra.mxu0 %v2165
    %2289 = vmatpush.bf16.msra.mxu0 %v2163
    %2290 = vmatpush.bf16.msra.mxu0 %v2161
    %2291 = vmatpush.bf16.msra.mxu0 %v2159
    %2292 = vmatpush.bf16.msra.mxu0 %v2157
    %2293 = vmatmul.bf16.gmra.mxu0 %v1891
    %v2294 = vpop.f32.mrf.mxu0
    %v2295 = vadd.f32 %v1961, %v2294
    %v2296 = vpop.f32.mrf.mxu0
    %v2297 = vadd.f32 %v1961, %v2296
    %2298 = vdwg.mxu0
    %2299 = vmatpush.bf16.msra.mxu0 %v2187
    %2300 = vmatpush.bf16.msra.mxu0 %v2185
    %2301 = vmatpush.bf16.msra.mxu0 %v2183
    %2302 = vmatpush.bf16.msra.mxu0 %v2181
    %2303 = vmatpush.bf16.msra.mxu0 %v2179
    %2304 = vmatpush.bf16.msra.mxu0 %v2177
    %2305 = vmatpush.bf16.msra.mxu0 %v2175
    %2306 = vmatpush.bf16.msra.mxu0 %v2173
    %2307 = vmatmul.bf16.gmra.mxu0 %v1892
    %v2308 = vpop.f32.mrf.mxu0
    %v2309 = vadd.f32 %v2295, %v2308
    %v2310 = vpop.f32.mrf.mxu0
    %v2311 = vadd.f32 %v2297, %v2310
    %2312 = vdwg.mxu0
    %2313 = vmatpush.bf16.msra.mxu0 %v2203
    %2314 = vmatpush.bf16.msra.mxu0 %v2201
    %2315 = vmatpush.bf16.msra.mxu0 %v2199
    %2316 = vmatpush.bf16.msra.mxu0 %v2197
    %2317 = vmatpush.bf16.msra.mxu0 %v2195
    %2318 = vmatpush.bf16.msra.mxu0 %v2193
    %2319 = vmatpush.bf16.msra.mxu0 %v2191
    %2320 = vmatpush.bf16.msra.mxu0 %v2189
    %2321 = vmatmul.bf16.gmra.mxu0 %v1893
    %v2322 = vpop.f32.mrf.mxu0
    %v2323 = vadd.f32 %v2309, %v2322
    %v2324 = vpop.f32.mrf.mxu0
    %v2325 = vadd.f32 %v2311, %v2324
    %2326 = vdwg.mxu0
    %2327 = vmatpush.bf16.msra.mxu0 %v2219
    %2328 = vmatpush.bf16.msra.mxu0 %v2217
    %2329 = vmatpush.bf16.msra.mxu0 %v2215
    %2330 = vmatpush.bf16.msra.mxu0 %v2213
    %2331 = vmatpush.bf16.msra.mxu0 %v2211
    %2332 = vmatpush.bf16.msra.mxu0 %v2209
    %2333 = vmatpush.bf16.msra.mxu0 %v2207
    %2334 = vmatpush.bf16.msra.mxu0 %v2205
    %2335 = vmatmul.bf16.gmra.mxu0 %v1894
    %v2336 = vpop.f32.mrf.mxu0
    %v2337 = vadd.f32 %v2323, %v2336
    %v2338 = vpop.f32.mrf.mxu0
    %v2339 = vadd.f32 %v2325, %v2338
    %2340 = vdwg.mxu0
    %2341 = vmatpush.bf16.msra.mxu0 %v2172
    %2342 = vmatpush.bf16.msra.mxu0 %v2170
    %2343 = vmatpush.bf16.msra.mxu0 %v2168
    %2344 = vmatpush.bf16.msra.mxu0 %v2166
    %2345 = vmatpush.bf16.msra.mxu0 %v2164
    %2346 = vmatpush.bf16.msra.mxu0 %v2162
    %2347 = vmatpush.bf16.msra.mxu0 %v2160
    %2348 = vmatpush.bf16.msra.mxu0 %v2158
    %2349 = vmatmul.bf16.gmra.mxu0 %v1891
    %v2350 = vpop.f32.mrf.mxu0
    %v2351 = vadd.f32 %v1962, %v2350
    %v2352 = vpop.f32.mrf.mxu0
    %v2353 = vadd.f32 %v1962, %v2352
    %2354 = vdwg.mxu0
    %2355 = vmatpush.bf16.msra.mxu0 %v2188
    %2356 = vmatpush.bf16.msra.mxu0 %v2186
    %2357 = vmatpush.bf16.msra.mxu0 %v2184
    %2358 = vmatpush.bf16.msra.mxu0 %v2182
    %2359 = vmatpush.bf16.msra.mxu0 %v2180
    %2360 = vmatpush.bf16.msra.mxu0 %v2178
    %2361 = vmatpush.bf16.msra.mxu0 %v2176
    %2362 = vmatpush.bf16.msra.mxu0 %v2174
    %2363 = vmatmul.bf16.gmra.mxu0 %v1892
    %v2364 = vpop.f32.mrf.mxu0
    %v2365 = vadd.f32 %v2351, %v2364
    %v2366 = vpop.f32.mrf.mxu0
    %v2367 = vadd.f32 %v2353, %v2366
    %2368 = vdwg.mxu0
    %2369 = vmatpush.bf16.msra.mxu0 %v2204
    %2370 = vmatpush.bf16.msra.mxu0 %v2202
    %2371 = vmatpush.bf16.msra.mxu0 %v2200
    %2372 = vmatpush.bf16.msra.mxu0 %v2198
    %2373 = vmatpush.bf16.msra.mxu0 %v2196
    %2374 = vmatpush.bf16.msra.mxu0 %v2194
    %2375 = vmatpush.bf16.msra.mxu0 %v2192
    %2376 = vmatpush.bf16.msra.mxu0 %v2190
    %2377 = vmatmul.bf16.gmra.mxu0 %v1893
    %v2378 = vpop.f32.mrf.mxu0
    %v2379 = vadd.f32 %v2365, %v2378
    %v2380 = vpop.f32.mrf.mxu0
    %v2381 = vadd.f32 %v2367, %v2380
    %2382 = vdwg.mxu0
    %2383 = vmatpush.bf16.msra.mxu0 %v2220
    %2384 = vmatpush.bf16.msra.mxu0 %v2218
    %2385 = vmatpush.bf16.msra.mxu0 %v2216
    %2386 = vmatpush.bf16.msra.mxu0 %v2214
    %2387 = vmatpush.bf16.msra.mxu0 %v2212
    %2388 = vmatpush.bf16.msra.mxu0 %v2210
    %2389 = vmatpush.bf16.msra.mxu0 %v2208
    %2390 = vmatpush.bf16.msra.mxu0 %v2206
    %2391 = vmatmul.bf16.gmra.mxu0 %v1894
    %v2392 = vpop.f32.mrf.mxu0
    %v2393 = vadd.f32 %v2379, %v2392
    %v2394 = vpop.f32.mrf.mxu0
    %v2395 = vadd.f32 %v2381, %v2394
    %2396 = vdwg.mxu0
    %v2397 = vadd.f32 %v2337, %v2393
    %2398 = vadd.xlane.f32.xlu0 %v2397
    %v2399 = vpop.xlane.xlu0 %2398
    %v2400 = vadd.f32 %v2339, %v2395
    %2401 = vadd.xlane.f32.xlu0 %v2400
    %v2402 = vpop.xlane.xlu0 %2401
    %v2403 = vrcp.pop 256.0
    %v2404 = vmul.f32 256.0, %v2403
    %v2405 = vsub.f32 1.0, %v2404
    %v2406 = vmul.f32 %v2403, %v2405
    %v2407 = vadd.f32 %v2403, %v2406
    %vm2408 = vweird.f32 %v2403
    %v2409 = vsel %vm2408, %v2403, %v2407
    %v2410 = vmul.f32 %v2399, %v2409
    %v2411 = vmul.f32 %v2402, %v2409
    %v2412 = vsub.f32 %v2337, %v2410
    %v2413 = vsub.f32 %v2393, %v2410
    %v2414 = vsub.f32 %v2339, %v2411
    %v2415 = vsub.f32 %v2395, %v2411
    %v2416 = vmul.f32 %v2412, %v2412
    %v2417 = vmul.f32 %v2413, %v2413
    %v2418 = vmul.f32 %v2414, %v2414
    %v2419 = vmul.f32 %v2415, %v2415
    %v2420 = vadd.f32 %v2416, %v2417
    %2421 = vadd.xlane.f32.xlu0 %v2420
    %v2422 = vpop.xlane.xlu0 %2421
    %v2423 = vadd.f32 %v2418, %v2419
    %2424 = vadd.xlane.f32.xlu0 %v2423
    %v2425 = vpop.xlane.xlu0 %2424
    %v2426 = vmul.f32 %v2422, %v2409
    %v2427 = vmul.f32 %v2425, %v2409
    %v2428 = vadd.f32 %v2426, 1e-05
    %v2429 = vadd.f32 %v2427, 1e-05
    %v2430 = vrsqrt.pop %v2428
    %v2431 = vmul.f32 %v2430, %v2428
    %v2432 = vmul.f32 %v2431, %v2430
    %v2433 = vmul.f32 0.5, %v2432
    %v2434 = vsub.f32 1.5, %v2433
    %v2435 = vmul.f32 %v2430, %v2434
    %vm2436 = vweird.f32 %v2428
    %vm2437 = vweird.f32 %v2430
    %vm2438 = vmor %vm2436, %vm2437
    %v2439 = vsel %vm2438, %v2430, %v2435
    %v2440 = vrsqrt.pop %v2429
    %v2441 = vmul.f32 %v2440, %v2429
    %v2442 = vmul.f32 %v2441, %v2440
    %v2443 = vmul.f32 0.5, %v2442
    %v2444 = vsub.f32 1.5, %v2443
    %v2445 = vmul.f32 %v2440, %v2444
    %vm2446 = vweird.f32 %v2429
    %vm2447 = vweird.f32 %v2440
    %vm2448 = vmor %vm2446, %vm2447
    %v2449 = vsel %vm2448, %v2440, %v2445
    %v2450 = vmul.f32 %v2412, %v2439
    %v2451 = vmul.f32 %v2413, %v2439
    %v2452 = vmul.f32 %v2414, %v2449
    %v2453 = vmul.f32 %v2415, %v2449
    %v2454 = vpack.c.bf16 %v2451, %v2450
    %v2455 = vpack.c.bf16 %v2453, %v2452
    %v2456 = vld [vmem:[%s7] sm:$0x3]
    %2458 = vst [vmem:[#allocation1] ss:$9 sm:$0xff] %v2456
    %v2459 = vld [vmem:[#allocation1] sm:$0xff]
    %v2460 = vld [vmem:[#allocation1 + $0x9] sm:$0xff]
    %v2461 = vpack.i.b16 %v2459, %v2459
    %v2463 = vperm.slane %v2461, 0
    %v2464 = vpack.i.b16 %v2460, %v2460
    %v2466 = vperm.slane %v2464, 0
    %v2467 = vunpack.c.l.bf16 %v2454
    %v2468 = vunpack.c.h.bf16 %v2454
    %v2469 = vunpack.c.l.bf16 %v2455
    %v2470 = vunpack.c.h.bf16 %v2455
    %v2471 = vunpack.c.l.bf16 %v2463
    %v2472 = vunpack.c.l.bf16 %v2466
    %v2473 = vmul.f32 %v2467, %v2471
    %v2474 = vmul.f32 %v2468, %v2472
    %v2475 = vmul.f32 %v2469, %v2471
    %v2476 = vmul.f32 %v2470, %v2472
    %v2477 = vpack.c.bf16 %v2474, %v2473
    %v2478 = vpack.c.bf16 %v2476, %v2475
    %v2479 = vld [vmem:[%s8] sm:$0x3]
    %2481 = vst [vmem:[#allocation1] ss:$9 sm:$0xff] %v2479
    %v2482 = vld [vmem:[#allocation1] sm:$0xff]
    %v2483 = vld [vmem:[#allocation1 + $0x9] sm:$0xff]
    %v2484 = vpack.i.b16 %v2482, %v2482
    %v2486 = vperm.slane %v2484, 0
    %v2487 = vpack.i.b16 %v2483, %v2483
    %v2489 = vperm.slane %v2487, 0
    %v2490 = vunpack.c.l.bf16 %v2477
    %v2491 = vunpack.c.h.bf16 %v2477
    %v2492 = vunpack.c.l.bf16 %v2478
    %v2493 = vunpack.c.h.bf16 %v2478
    %v2494 = vunpack.c.l.bf16 %v2486
    %v2495 = vunpack.c.l.bf16 %v2489
    %v2496 = vadd.f32 %v2490, %v2494
    %v2497 = vadd.f32 %v2491, %v2495
    %v2498 = vadd.f32 %v2492, %v2494
    %v2499 = vadd.f32 %v2493, %v2495
    %v2500 = vpack.c.bf16 %v2497, %v2496
    %v2501 = vpack.c.bf16 %v2499, %v2498
    %v2502 = vunpack.c.l.bf16 %v2500
    %v2503 = vunpack.c.h.bf16 %v2500
    %v2504 = vunpack.c.l.bf16 %v2501
    %v2505 = vunpack.c.h.bf16 %v2501
    %v2506 = vmul.f32 %v2502, 0.010009766
    %v2507 = vmul.f32 %v2503, 0.010009766
    %v2508 = vmul.f32 %v2504, 0.010009766
    %v2509 = vmul.f32 %v2505, 0.010009766
    %v2510 = vpack.c.bf16 %v2507, %v2506
    %v2511 = vpack.c.bf16 %v2509, %v2508
    %v2512 = vunpack.c.l.bf16 %v2510
    %v2513 = vunpack.c.h.bf16 %v2510
    %v2514 = vunpack.c.l.bf16 %v2511
    %v2515 = vunpack.c.h.bf16 %v2511
    %v2516 = vmax.f32 %v2502, %v2512
    %v2517 = vmax.f32 %v2503, %v2513
    %v2518 = vmax.f32 %v2504, %v2514
    %v2519 = vmax.f32 %v2505, %v2515
    %v2520 = vpack.c.bf16 %v2518, %v2516
    %v2521 = vpack.c.bf16 %v2519, %v2517
    %v2522 = vld [vmem:[%s9] sm:$0xf]
    %v2523 = vld [vmem:[%s9 + $0x4] sm:$0xf]
    %v2524 = vld [vmem:[%s9 + $0x8] sm:$0xf]
    %v2525 = vld [vmem:[%s9 + $0xc] sm:$0xf]
    %v2526 = vld [vmem:[%s9 + $0x10] sm:$0xf]
    %v2527 = vld [vmem:[%s9 + $0x14] sm:$0xf]
    %v2528 = vld [vmem:[%s9 + $0x18] sm:$0xf]
    %v2529 = vld [vmem:[%s9 + $0x1c] sm:$0xf]
    %v2530 = vld [vmem:[%s9 + $0x20] sm:$0xf]
    %v2531 = vld [vmem:[%s9 + $0x24] sm:$0xf]
    %v2532 = vld [vmem:[%s9 + $0x28] sm:$0xf]
    %v2533 = vld [vmem:[%s9 + $0x2c] sm:$0xf]
    %v2534 = vld [vmem:[%s9 + $0x30] sm:$0xf]
    %v2535 = vld [vmem:[%s9 + $0x34] sm:$0xf]
    %v2536 = vld [vmem:[%s9 + $0x38] sm:$0xf]
    %v2537 = vld [vmem:[%s9 + $0x3c] sm:$0xf]
    %v2538 = vld [vmem:[%s9 + $0x40] sm:$0xf]
    %v2539 = vld [vmem:[%s9 + $0x44] sm:$0xf]
    %v2540 = vld [vmem:[%s9 + $0x48] sm:$0xf]
    %v2541 = vld [vmem:[%s9 + $0x4c] sm:$0xf]
    %v2542 = vld [vmem:[%s9 + $0x50] sm:$0xf]
    %v2543 = vld [vmem:[%s9 + $0x54] sm:$0xf]
    %v2544 = vld [vmem:[%s9 + $0x58] sm:$0xf]
    %v2545 = vld [vmem:[%s9 + $0x5c] sm:$0xf]
    %v2546 = vld [vmem:[%s9 + $0x60] sm:$0xf]
    %v2547 = vld [vmem:[%s9 + $0x64] sm:$0xf]
    %v2548 = vld [vmem:[%s9 + $0x68] sm:$0xf]
    %v2549 = vld [vmem:[%s9 + $0x6c] sm:$0xf]
    %v2550 = vld [vmem:[%s9 + $0x70] sm:$0xf]
    %v2551 = vld [vmem:[%s9 + $0x74] sm:$0xf]
    %v2552 = vld [vmem:[%s9 + $0x78] sm:$0xf]
    %v2553 = vld [vmem:[%s9 + $0x7c] sm:$0xf]
    %v2554 = vld [vmem:[%s10] sm:$0x1]
    %v2556 = vperm.slane %v2554, 0
    %v2590 = vunpack.c.l.b16 %v2522
    %v2591 = vunpack.c.l.b16 %v2523
    %v2592 = vunpack.c.l.b16 %v2524
    %v2593 = vunpack.c.l.b16 %v2525
    %v2594 = vunpack.c.l.b16 %v2526
    %v2595 = vunpack.c.l.b16 %v2527
    %v2596 = vunpack.c.l.b16 %v2528
    %v2597 = vunpack.c.l.b16 %v2529
    %v2598 = vunpack.c.l.b16 %v2530
    %v2599 = vunpack.c.l.b16 %v2531
    %v2600 = vunpack.c.l.b16 %v2532
    %v2601 = vunpack.c.l.b16 %v2533
    %v2602 = vunpack.c.l.b16 %v2534
    %v2603 = vunpack.c.l.b16 %v2535
    %v2604 = vunpack.c.l.b16 %v2536
    %v2605 = vunpack.c.l.b16 %v2537
    %v2606 = vunpack.c.l.b16 %v2538
    %v2607 = vunpack.c.l.b16 %v2539
    %v2608 = vunpack.c.l.b16 %v2540
    %v2609 = vunpack.c.l.b16 %v2541
    %v2610 = vunpack.c.l.b16 %v2542
    %v2611 = vunpack.c.l.b16 %v2543
    %v2612 = vunpack.c.l.b16 %v2544
    %v2613 = vunpack.c.l.b16 %v2545
    %v2614 = vunpack.c.l.b16 %v2546
    %v2615 = vunpack.c.l.b16 %v2547
    %v2616 = vunpack.c.l.b16 %v2548
    %v2617 = vunpack.c.l.b16 %v2549
    %v2618 = vunpack.c.l.b16 %v2550
    %v2619 = vunpack.c.l.b16 %v2551
    %v2620 = vunpack.c.l.b16 %v2552
    %v2621 = vunpack.c.l.b16 %v2553
    %v2622 = vpack.c.b16 %v2591, %v2590
    %v2623 = vpack.c.b16 %v2593, %v2592
    %v2624 = vpack.c.b16 %v2595, %v2594
    %v2625 = vpack.c.b16 %v2597, %v2596
    %v2626 = vpack.c.b16 %v2599, %v2598
    %v2627 = vpack.c.b16 %v2601, %v2600
    %v2628 = vpack.c.b16 %v2603, %v2602
    %v2629 = vpack.c.b16 %v2605, %v2604
    %v2630 = vpack.c.b16 %v2607, %v2606
    %v2631 = vpack.c.b16 %v2609, %v2608
    %v2632 = vpack.c.b16 %v2611, %v2610
    %v2633 = vpack.c.b16 %v2613, %v2612
    %v2634 = vpack.c.b16 %v2615, %v2614
    %v2635 = vpack.c.b16 %v2617, %v2616
    %v2636 = vpack.c.b16 %v2619, %v2618
    %v2637 = vpack.c.b16 %v2621, %v2620
    %2654 = vmatpush.bf16.msra.mxu0 %v2629
    %2655 = vmatpush.bf16.msra.mxu0 %v2628
    %2656 = vmatpush.bf16.msra.mxu0 %v2627
    %2657 = vmatpush.bf16.msra.mxu0 %v2626
    %2658 = vmatpush.bf16.msra.mxu0 %v2625
    %2659 = vmatpush.bf16.msra.mxu0 %v2624
    %2660 = vmatpush.bf16.msra.mxu0 %v2623
    %2661 = vmatpush.bf16.msra.mxu0 %v2622
    %2662 = vmatmul.bf16.gmra.mxu0 %v2520
    %v2663 = vpop.f32.mrf.mxu0
    %v2664 = vadd.f32 %v2556, %v2663
    %v2665 = vpop.f32.mrf.mxu0
    %v2666 = vadd.f32 %v2556, %v2665
    %2667 = vdwg.mxu0
    %2668 = vmatpush.bf16.msra.mxu0 %v2637
    %2669 = vmatpush.bf16.msra.mxu0 %v2636
    %2670 = vmatpush.bf16.msra.mxu0 %v2635
    %2671 = vmatpush.bf16.msra.mxu0 %v2634
    %2672 = vmatpush.bf16.msra.mxu0 %v2633
    %2673 = vmatpush.bf16.msra.mxu0 %v2632
    %2674 = vmatpush.bf16.msra.mxu0 %v2631
    %2675 = vmatpush.bf16.msra.mxu0 %v2630
    %2676 = vmatmul.bf16.gmra.mxu0 %v2521
    %v2677 = vpop.f32.mrf.mxu0
    %v2678 = vadd.f32 %v2664, %v2677
    %v2679 = vpop.f32.mrf.mxu0
    %v2680 = vadd.f32 %v2666, %v2679
    %2681 = vdwg.mxu0
    %2682 = vadd.xlane.f32.xlu0 %v2678
    %v2683 = vpop.xlane.xlu0 %2682
    %2684 = vadd.xlane.f32.xlu0 %v2680
    %v2685 = vpop.xlane.xlu0 %2684
    %v2686 = vrcp.pop 128.0
    %v2687 = vmul.f32 128.0, %v2686
    %v2688 = vsub.f32 1.0, %v2687
    %v2689 = vmul.f32 %v2686, %v2688
    %v2690 = vadd.f32 %v2686, %v2689
    %vm2691 = vweird.f32 %v2686
    %v2692 = vsel %vm2691, %v2686, %v2690
    %v2693 = vmul.f32 %v2683, %v2692
    %v2694 = vmul.f32 %v2685, %v2692
    %v2695 = vsub.f32 %v2678, %v2693
    %v2696 = vsub.f32 %v2680, %v2694
    %v2697 = vmul.f32 %v2695, %v2695
    %v2698 = vmul.f32 %v2696, %v2696
    %2699 = vadd.xlane.f32.xlu0 %v2697
    %v2700 = vpop.xlane.xlu0 %2699
    %2701 = vadd.xlane.f32.xlu0 %v2698
    %v2702 = vpop.xlane.xlu0 %2701
    %v2703 = vmul.f32 %v2700, %v2692
    %v2704 = vmul.f32 %v2702, %v2692
    %v2705 = vadd.f32 %v2703, 1e-05
    %v2706 = vadd.f32 %v2704, 1e-05
    %v2707 = vrsqrt.pop %v2705
    %v2708 = vmul.f32 %v2707, %v2705
    %v2709 = vmul.f32 %v2708, %v2707
    %v2710 = vmul.f32 0.5, %v2709
    %v2711 = vsub.f32 1.5, %v2710
    %v2712 = vmul.f32 %v2707, %v2711
    %vm2713 = vweird.f32 %v2705
    %vm2714 = vweird.f32 %v2707
    %vm2715 = vmor %vm2713, %vm2714
    %v2716 = vsel %vm2715, %v2707, %v2712
    %v2717 = vrsqrt.pop %v2706
    %v2718 = vmul.f32 %v2717, %v2706
    %v2719 = vmul.f32 %v2718, %v2717
    %v2720 = vmul.f32 0.5, %v2719
    %v2721 = vsub.f32 1.5, %v2720
    %v2722 = vmul.f32 %v2717, %v2721
    %vm2723 = vweird.f32 %v2706
    %vm2724 = vweird.f32 %v2717
    %vm2725 = vmor %vm2723, %vm2724
    %v2726 = vsel %vm2725, %v2717, %v2722
    %v2727 = vmul.f32 %v2695, %v2716
    %v2728 = vmul.f32 %v2696, %v2726
    %v2729 = vpack.c.bf16 %v2727, %v2727
    %v2730 = vpack.c.bf16 %v2728, %v2728
    %v2731 = vld [vmem:[%s11] sm:$0x1]
    %v2733 = vpack.i.b16 %v2731, %v2731
    %v2735 = vperm.slane %v2733, 0
    %v2736 = vunpack.c.l.bf16 %v2729
    %v2737 = vunpack.c.l.bf16 %v2730
    %v2738 = vunpack.c.l.bf16 %v2735
    %v2739 = vmul.f32 %v2736, %v2738
    %v2740 = vmul.f32 %v2737, %v2738
    %v2741 = vpack.c.bf16 %v2739, %v2739
    %v2742 = vpack.c.bf16 %v2740, %v2740
    %v2743 = vld [vmem:[%s12] sm:$0x1]
    %v2745 = vpack.i.b16 %v2743, %v2743
    %v2747 = vperm.slane %v2745, 0
    %v2748 = vunpack.c.l.bf16 %v2741
    %v2749 = vunpack.c.l.bf16 %v2742
    %v2750 = vunpack.c.l.bf16 %v2747
    %v2751 = vadd.f32 %v2748, %v2750
    %v2752 = vadd.f32 %v2749, %v2750
    %v2753 = vpack.c.bf16 %v2751, %v2751
    %v2754 = vpack.c.bf16 %v2752, %v2752
    %v2755 = vunpack.c.l.bf16 %v2753
    %v2756 = vunpack.c.l.bf16 %v2754
    %v2757 = vmul.f32 %v2755, 0.010009766
    %v2758 = vmul.f32 %v2756, 0.010009766
    %v2759 = vpack.c.bf16 %v2757, %v2757
    %v2760 = vpack.c.bf16 %v2758, %v2758
    %v2761 = vunpack.c.l.bf16 %v2759
    %v2762 = vunpack.c.l.bf16 %v2760
    %v2763 = vmax.f32 %v2755, %v2761
    %v2764 = vmax.f32 %v2756, %v2762
    %v2765 = vpack.c.bf16 %v2763, %v2763
    %v2766 = vpack.c.bf16 %v2764, %v2764
    %v2767 = vunpack.c.l.bf16 %v2765
    %v2768 = vunpack.c.l.bf16 %v2766
    %v2769 = vld [vmem:[%s13] sm:$0x1]
    %v2771 = vperm.slane %v2769, 0
    %v2773 = vmul.f32 %v2767, %v2771
    %v2774 = vmul.f32 %v2768, %v2771
    %2775 = vadd.xlane.f32.xlu0 %v2773
    %v2776 = vpop.xlane.xlu0 %2775
    %2777 = vadd.xlane.f32.xlu0 %v2774
    %v2778 = vpop.xlane.xlu0 %2777
    %v2779 = vld [vmem:[#allocation2] sm:$0x1]
    %v2781 = vperm.slane %v2779, 0
    %v2783 = vadd.f32 %v2776, %v2781
    %v2784 = vadd.f32 %v2778, %v2781
    %vm2785 = vcmask 7168
    %2786 = vst.msk [vmem:[%s15] sm:$0xff] %vm2785, %v2783
    %2787 = vst.msk [vmem:[%s15 + $0x8] sm:$0xff] %vm2785, %v2784
    // Predicated region
    $region70: #{discriminator_forward.1} parent=1 // pred_check
      _
    $region71: #{discriminator_forward.1} parent=1 // pred_check_branch
      %2789 = sbr.rel (0) target = $region73
    $region72: #{discriminator_forward.1} parent=1 // pred_region
      _
    $region73: #{discriminator_forward.1} parent=1 // pred_fallthru
      _
    // Predicated region
    $region74: #{discriminator_forward.1} parent=1 // pred_check
      _
    $region75: #{discriminator_forward.1} parent=1 // pred_check_branch
      %2791 = sbr.rel (0) target = $region77
    $region76: #{discriminator_forward.1} parent=1 // pred_region
      _
    $region77: #{discriminator_forward.1} parent=1 // pred_fallthru
      _
    %2792 = vsyncpa [#allocation4], 1
    %2793 = vsyncpa [#allocation6], 1

</llo_original>
